<compile_context>
chip_gen: v7x
topology: tpu7x:2x2x1
jax: 0.10.0
libtpu: 0.0.40
codegen_flags: <defaults>
</compile_context>

<pallas_src>
import functools
import math
from random import randint

import jax
import jax.numpy as jnp
from jax.experimental import pallas as pl
from jax.experimental.pallas import tpu as pltpu

F32 = jnp.float32
BF16 = jnp.bfloat16
_LRELU_SLOPE = 0.1
_BN_EPS = 1e-5
_VMEM_LIMIT = 32 * 1024 * 1024   # safe on v7x (64 MiB/TC); plenty on v5e/v6e


def _round_up(x, m):
    return ((x + m - 1) // m) * m


# ---------------------------------------------------------------------------
# Pallas kernel 1: tiled bf16 MXU matmul + bias (+ optional fused LeakyReLU)
#                  with fused per-channel sum / sum-of-squares (BN stats)
# ---------------------------------------------------------------------------
def _mm_kernel(a_ref, b_ref, bias_ref, o_ref, s_ref, q_ref, *acc,
               nk, act_slope):
    def epilogue(acc_val):
        # BN batch stats on the *pre-bias* matmul result. Zero-padded M rows
        # contribute exactly zero here, so no row mask (and no program_id
        # inside pl.when) is needed; the bias contribution to sum / sumsq is
        # added analytically in the wrapper.
        s = jnp.sum(acc_val, axis=0, keepdims=True)             # (1, tn)
        q = jnp.sum(acc_val * acc_val, axis=0, keepdims=True)   # (1, tn)
        s_ref[...] = jnp.broadcast_to(s, s_ref.shape)
        q_ref[...] = jnp.broadcast_to(q, q_ref.shape)
        y = acc_val + bias_ref[...]
        if act_slope is not None:
            y = jnp.where(y >= 0, y, act_slope * y)
        o_ref[...] = y.astype(o_ref.dtype)

    if nk == 1:
        # single reduction step: write straight out, no acc scratch round-trip
        epilogue(jnp.dot(a_ref[...], b_ref[...],
                         preferred_element_type=jnp.float32))
    else:
        acc_ref = acc[0]

        @pl.when(pl.program_id(2) == 0)
        def _init():
            acc_ref[...] = jnp.zeros_like(acc_ref)

        acc_ref[...] += jnp.dot(a_ref[...], b_ref[...],
                                preferred_element_type=jnp.float32)

        @pl.when(pl.program_id(2) == nk - 1)
        def _done():
            epilogue(acc_ref[...])


def matmul_bias_stats(a, b, bias, act_slope=None):
    """bf16 (M,K)@(K,N) + bias (f32 accum). Returns (out_f32, col_sum, col_sumsq)."""
    m, k = a.shape
    k2, n = b.shape
    assert k == k2
    tm = min(512, _round_up(m, 8))
    # keep >=2 n-blocks for the small-M late layers so both v7x TCs get work
    tn_cap = 512 if _round_up(m, 8) > 256 else 256
    tn = n if n < 128 else min(tn_cap, _round_up(n, 128))
    tk = k if (k < 128 and k % 8 == 0) else min(512, _round_up(k, 128))
    mp, kp, np_ = _round_up(m, tm), _round_up(k, tk), _round_up(n, tn)
    gm, gn, gk = mp // tm, np_ // tn, kp // tk

    a_p = jnp.pad(a.astype(BF16), ((0, mp - m), (0, kp - k)))
    b_p = jnp.pad(b.astype(BF16), ((0, kp - k), (0, np_ - n)))
    bias_p = jnp.pad(bias.astype(F32).reshape(1, n), ((0, 0), (0, np_ - n)))

    kernel = functools.partial(_mm_kernel, nk=gk, act_slope=act_slope)
    scratch = [pltpu.VMEM((tm, tn), jnp.float32)] if gk > 1 else []
    out, s, q = pl.pallas_call(
        kernel,
        out_shape=(jax.ShapeDtypeStruct((mp, np_), F32),
                   jax.ShapeDtypeStruct((gm * 8, np_), F32),
                   jax.ShapeDtypeStruct((gm * 8, np_), F32)),
        grid_spec=pltpu.PrefetchScalarGridSpec(
            num_scalar_prefetch=0,
            grid=(gm, gn, gk),
            in_specs=[
                pl.BlockSpec((tm, tk), lambda i, j, kk: (i, kk)),
                pl.BlockSpec((tk, tn), lambda i, j, kk: (kk, j)),
                pl.BlockSpec((1, tn), lambda i, j, kk: (0, j)),
            ],
            out_specs=(
                pl.BlockSpec((tm, tn), lambda i, j, kk: (i, j)),
                pl.BlockSpec((8, tn), lambda i, j, kk: (i, j)),
                pl.BlockSpec((8, tn), lambda i, j, kk: (i, j)),
            ),
            scratch_shapes=scratch),
        compiler_params=pltpu.CompilerParams(
            dimension_semantics=("parallel", "parallel", "arbitrary"),
            vmem_limit_bytes=_VMEM_LIMIT),
    )(a_p, b_p, bias_p)
    # rows within an 8-row tile-group are replicas; sum across M tile-groups,
    # then add the bias contribution for the m real rows analytically.
    s0 = s[::8, :n].sum(axis=0)
    q0 = q[::8, :n].sum(axis=0)
    bias_f = bias.astype(F32).reshape(n)
    mf = jnp.asarray(float(m), F32)
    col_sum = s0 + mf * bias_f
    col_sq = q0 + 2.0 * bias_f * s0 + mf * bias_f * bias_f
    return out[:m, :n], col_sum, col_sq


# ---------------------------------------------------------------------------
# Lane-dense folding helpers for the elementwise kernels
# ---------------------------------------------------------------------------
def _fold_factor(c):
    return 128 // c if (c < 128 and 128 % c == 0) else 1


def _fold(x2d, g):
    p, c = x2d.shape
    if g == 1:
        return x2d
    pg = _round_up(p, g)
    if pg != p:
        x2d = jnp.pad(x2d, ((0, pg - p), (0, 0)))
    return x2d.reshape(pg // g, g * c)


def _row_tile(c_eff, rows, target_bytes=2 << 20):
    t = max(256, min(2048, target_bytes // (c_eff * 4)))
    t = min(t, _round_up(rows, 8))
    return max(8, (t // 8) * 8)


# ---------------------------------------------------------------------------
# Pallas kernel 2: fused per-channel affine (BN) + LeakyReLU (+ residual add)
# ---------------------------------------------------------------------------
def _affine_kernel(x_ref, s_ref, t_ref, o_ref, *, slope):
    y = x_ref[...] * s_ref[...] + t_ref[...]
    if slope is not None:
        y = jnp.where(y >= 0, y, slope * y)
    o_ref[...] = y


def _affine_res_kernel(x_ref, s_ref, t_ref, r_ref, o_ref, *, slope):
    y = x_ref[...] * s_ref[...] + t_ref[...]
    y = jnp.where(y >= 0, y, slope * y)
    o_ref[...] = y + r_ref[...]


def affine_act(x2d, scale, shift, slope=None, residual=None):
    p, c = x2d.shape
    g = _fold_factor(c)
    ce = g * c
    xf = _fold(x2d.astype(F32), g)
    rows = xf.shape[0]
    tr = _row_tile(ce, rows)
    rp = _round_up(rows, tr)
    if rp != rows:
        xf = jnp.pad(xf, ((0, rp - rows), (0, 0)))
    sv = jnp.tile(scale.astype(F32).reshape(1, c), (1, g))
    tv = jnp.tile(shift.astype(F32).reshape(1, c), (1, g))
    row_spec = pl.BlockSpec((tr, ce), lambda i: (i, 0))
    vec_spec = pl.BlockSpec((1, ce), lambda i: (0, 0))
    cp = pltpu.CompilerParams(dimension_semantics=("parallel",),
                              vmem_limit_bytes=_VMEM_LIMIT)
    if residual is None:
        out = pl.pallas_call(
            functools.partial(_affine_kernel, slope=slope),
            out_shape=jax.ShapeDtypeStruct((rp, ce), F32),
            grid_spec=pltpu.PrefetchScalarGridSpec(
                num_scalar_prefetch=0, grid=(rp // tr,),
                in_specs=[row_spec, vec_spec, vec_spec],
                out_specs=row_spec),
            compiler_params=cp,
        )(xf, sv, tv)
    else:
        rf = _fold(residual.astype(F32), g)
        if rp != rows:
            rf = jnp.pad(rf, ((0, rp - rows), (0, 0)))
        out = pl.pallas_call(
            functools.partial(_affine_res_kernel, slope=slope),
            out_shape=jax.ShapeDtypeStruct((rp, ce), F32),
            grid_spec=pltpu.PrefetchScalarGridSpec(
                num_scalar_prefetch=0, grid=(rp // tr,),
                in_specs=[row_spec, vec_spec, vec_spec, row_spec],
                out_specs=row_spec),
            compiler_params=cp,
        )(xf, sv, tv, rf)
    return out.reshape(-1, c)[:p]


# ---------------------------------------------------------------------------
# Pallas kernel 3: fused BN-affine + GLU  (out = bn(a) * sigmoid(bn(b)))
# ---------------------------------------------------------------------------
def _bn_glu_kernel(a_ref, b_ref, sa_ref, ta_ref, sb_ref, tb_ref, o_ref):
    a = a_ref[...] * sa_ref[...] + ta_ref[...]
    b = b_ref[...] * sb_ref[...] + tb_ref[...]
    o_ref[...] = a * (1.0 / (1.0 + jnp.exp(-b)))


# ---------------------------------------------------------------------------
# NN building blocks (JAX glue around the Pallas kernels)
# ---------------------------------------------------------------------------
def conv2d(x, w, b, stride, padding, act_slope=None):
    """x: (N,H,W,Cin); w: (KH,KW,Cin,Cout). Returns (y_nhwc, sum_c, sumsq_c, count)."""
    n, h, wd, cin = x.shape
    kh, kw, _, cout = w.shape
    (pt, pb), (pL, pR) = padding
    xp = jnp.pad(x.astype(BF16), ((0, 0), (pt, pb), (pL, pR), (0, 0)))
    hp, wp = h + pt + pb, wd + pL + pR
    ho = (hp - kh) // stride + 1
    wo = (wp - kw) // stride + 1
    cols = []
    for i in range(kh):
        for j in range(kw):
            cols.append(xp[:, i:i + stride * (ho - 1) + 1:stride,
                           j:j + stride * (wo - 1) + 1:stride, :])
    patches = jnp.concatenate(cols, axis=-1).reshape(n * ho * wo, kh * kw * cin)
    y, s, q = matmul_bias_stats(patches,
                                w.reshape(kh * kw * cin, cout).astype(BF16),
                                b, act_slope=act_slope)
    return y.reshape(n, ho, wo, cout), s, q, n * ho * wo


def _bn_scale_shift(s, q, cnt, gamma, beta):
    mean = s / cnt
    var = q / cnt - mean * mean      # biased variance, as PyTorch BN normalization
    scale = gamma * jax.lax.rsqrt(var + _BN_EPS)
    shift = beta - mean * scale
    return scale, shift


def batchnorm_lrelu(conv_out, bn, residual=None, slope=_LRELU_SLOPE):
    """Training-mode BatchNorm2d + LeakyReLU on a fused-conv result, opt. + residual."""
    y, s, q, cnt = conv_out
    n, h, w, c = y.shape
    scale, shift = _bn_scale_shift(s, q, cnt, bn['gamma'], bn['beta'])
    res2 = None if residual is None else residual.reshape(-1, c)
    out = affine_act(y.reshape(-1, c), scale, shift, slope=slope, residual=res2)
    return out.reshape(n, h, w, c)


def batchnorm_glu(conv_out, bn):
    """Training-mode BatchNorm2d + GLU over the channel dim (decoder path)."""
    y, s, q, cnt = conv_out
    n, h, w, c2 = y.shape
    c = c2 // 2
    scale, shift = _bn_scale_shift(s, q, cnt, bn['gamma'], bn['beta'])
    y2 = y.reshape(-1, c2).astype(F32)
    p = y2.shape[0]
    g = _fold_factor(c)
    ce = g * c
    af = _fold(y2[:, :c], g)
    bf = _fold(y2[:, c:], g)
    rows = af.shape[0]
    tr = _row_tile(ce, rows)
    rp = _round_up(rows, tr)
    if rp != rows:
        af = jnp.pad(af, ((0, rp - rows), (0, 0)))
        bf = jnp.pad(bf, ((0, rp - rows), (0, 0)))
    tile_vec = lambda v: jnp.tile(v.astype(F32).reshape(1, c), (1, g))
    row_spec = pl.BlockSpec((tr, ce), lambda i: (i, 0))
    vec_spec = pl.BlockSpec((1, ce), lambda i: (0, 0))
    out = pl.pallas_call(
        _bn_glu_kernel,
        out_shape=jax.ShapeDtypeStruct((rp, ce), F32),
        grid_spec=pltpu.PrefetchScalarGridSpec(
            num_scalar_prefetch=0, grid=(rp // tr,),
            in_specs=[row_spec, row_spec, vec_spec, vec_spec, vec_spec, vec_spec],
            out_specs=row_spec),
        compiler_params=pltpu.CompilerParams(
            dimension_semantics=("parallel",),
            vmem_limit_bytes=_VMEM_LIMIT),
    )(af, bf, tile_vec(scale[:c]), tile_vec(shift[:c]),
      tile_vec(scale[c:]), tile_vec(shift[c:]))
    return out.reshape(-1, c)[:p].reshape(n, h, w, c)


def avg_pool2(x):
    n, h, w, c = x.shape
    return x.reshape(n, h // 2, 2, w // 2, 2, c).mean(axis=(2, 4))


def upsample_nearest2(x):
    return jnp.repeat(jnp.repeat(x, 2, axis=1), 2, axis=2)


# ---------------------------------------------------------------------------
# Parameter init (deterministic, PyTorch-default-like: U(-1/sqrt(fan_in), ...))
# ---------------------------------------------------------------------------
def _init_conv(key, cin, cout, k):
    wk, bk = jax.random.split(key)
    bound = 1.0 / math.sqrt(cin * k * k)
    w = jax.random.uniform(wk, (k, k, cin, cout), F32, -bound, bound)
    b = jax.random.uniform(bk, (cout,), F32, -bound, bound)
    return {'w': w, 'b': b}


def _init_bn(c):
    return {'gamma': jnp.ones((c,), F32), 'beta': jnp.zeros((c,), F32)}


def _init_residual_downsampler(key, cin, cout):
    k1, k2, k3 = jax.random.split(key, 3)
    return {'conv1': _init_conv(k1, cin, cout, 1), 'bn1': _init_bn(cout),
            'conv2': _init_conv(k2, cin, cout, 4), 'bn2': _init_bn(cout),
            'conv3': _init_conv(k3, cout, cout, 3), 'bn3': _init_bn(cout)}


def _init_upsampler(key, cin, cout):
    return {'conv': _init_conv(key, cin, cout * 2, 3), 'bn': _init_bn(cout * 2)}


def _init_simple_decoder(key, cin):
    k1, k2, k3, k4 = jax.random.split(key, 4)
    return [_init_upsampler(k1, cin, 256), _init_upsampler(k2, 256, 128),
            _init_upsampler(k3, 128, 128), _init_upsampler(k4, 128, 3)]


def init_discriminator(key, use_decoders, input_resolution):
    early = 8 if input_resolution == 256 else 32
    keys = jax.random.split(key, 11)
    p = {'conv1': _init_conv(keys[0], 3, early, 4),
         'conv2': _init_conv(keys[1], early, early, 4), 'bn2': _init_bn(early),
         'ds256': _init_residual_downsampler(keys[2], early, 64),
         'ds128': _init_residual_downsampler(keys[3], 64, 128),
         'ds64': _init_residual_downsampler(keys[4], 128, 128),
         'ds32': _init_residual_downsampler(keys[5], 128, 256),
         'ds16': _init_residual_downsampler(keys[6], 256, 512),
         'conv3': _init_conv(keys[7], 512, 256, 1), 'bn3': _init_bn(256),
         'conv4': _init_conv(keys[8], 256, 1, 4)}
    if use_decoders:
        p['decoder1'] = _init_simple_decoder(keys[9], 256)
        p['decoder2'] = _init_simple_decoder(keys[10], 512)
    return p


# ---------------------------------------------------------------------------
# Module forwards
# ---------------------------------------------------------------------------
def residual_downsampler(p, x):
    x1 = batchnorm_lrelu(
        conv2d(avg_pool2(x), p['conv1']['w'], p['conv1']['b'], 1, ((0, 0), (0, 0))),
        p['bn1'])
    x2 = batchnorm_lrelu(
        conv2d(x, p['conv2']['w'], p['conv2']['b'], 2, ((1, 1), (1, 1))), p['bn2'])
    # returns x1 + lrelu(bn3(conv3(x2)))  (residual add fused into the act kernel)
    return batchnorm_lrelu(
        conv2d(x2, p['conv3']['w'], p['conv3']['b'], 1, ((1, 1), (1, 1))),
        p['bn3'], residual=x1)


def upsampler(p, x):
    x = upsample_nearest2(x)
    return batchnorm_glu(
        conv2d(x, p['conv']['w'], p['conv']['b'], 1, ((1, 1), (1, 1))), p['bn'])


def simple_decoder(p, x):
    for up in p:
        x = upsampler(up, x)
    return x


_SAME_PAD_K4 = ((1, 2), (1, 2))   # PyTorch padding='same' for kernel_size=4


def discriminator_forward(params, x_nchw, label, *, use_decoders, input_resolution):
    x = jnp.transpose(x_nchw.astype(F32), (0, 2, 3, 1))   # NCHW -> NHWC
    stride = 1 if input_resolution == 256 else 2
    # conv1 + LeakyReLU fused into the matmul epilogue
    x1, _, _, _ = conv2d(x, params['conv1']['w'], params['conv1']['b'],
                         stride, _SAME_PAD_K4, act_slope=_LRELU_SLOPE)
    x_256 = batchnorm_lrelu(
        conv2d(x1, params['conv2']['w'], params['conv2']['b'], stride, _SAME_PAD_K4),
        params['bn2'])
    x_128 = residual_downsampler(params['ds256'], x_256)
    x_64 = residual_downsampler(params['ds128'], x_128)
    x_32 = residual_downsampler(params['ds64'], x_64)
    x_16 = residual_downsampler(params['ds32'], x_32)
    x_8 = residual_downsampler(params['ds16'], x_16)
    x_pen = batchnorm_lrelu(
        conv2d(x_8, params['conv3']['w'], params['conv3']['b'], 1, ((0, 0), (0, 0))),
        params['bn3'])
    logits, _, _, _ = conv2d(x_pen, params['conv4']['w'], params['conv4']['b'], 1,
                             ((0, 0), (0, 0)))
    logits = jnp.transpose(logits, (0, 3, 1, 2))           # back to NCHW
    if use_decoders and label == 1:
        n, h, w, c = x.shape
        # F.interpolate(mode='bilinear', align_corners=False) equivalent (glue).
        I = jax.image.resize(x, (n, 128, 128, c), method='bilinear', antialias=False)
        if input_resolution != 256:
            x = jax.image.resize(x, (n, 256, 256, c), method='bilinear', antialias=False)
        crop_area = randint(0, 3)   # host-side randomness, as in the PyTorch module
        if crop_area == 0:
            I_part, x_16_part = x[:, :128, :128, :], x_16[:, :8, :8, :]
        elif crop_area == 1:
            I_part, x_16_part = x[:, 128:, :128, :], x_16[:, 8:, :8, :]
        elif crop_area == 2:
            I_part, x_16_part = x[:, :128, 128:, :], x_16[:, :8, 8:, :]
        else:
            I_part, x_16_part = x[:, 128:, 128:, :], x_16[:, 8:, 8:, :]
        I_prime = simple_decoder(params['decoder2'], x_8)
        I_part_prime = simple_decoder(params['decoder1'], x_16_part)
        to_nchw = lambda t: jnp.transpose(t, (0, 3, 1, 2))
        return (logits, to_nchw(I), to_nchw(I_part), to_nchw(I_prime),
                to_nchw(I_part_prime))
    return logits


if __name__ == "__main__":
    key = jax.random.PRNGKey(0)
    pkey, xkey = jax.random.split(key)
    # padding='same' with stride!=1 is invalid in PyTorch, so input_resolution=256
    # (stride 1, 8 early filters) is the only constructible config.
    use_decoders = False
    input_resolution = 256
    params = init_discriminator(pkey, use_decoders, input_resolution)
    # Smallest spatial size the architecture supports: 5 downsampling stages
    # followed by a 4x4 valid conv require >= 128.  Batch 2, NCHW input.
    x = jax.random.normal(xkey, (2, 3, 128, 128), F32)
    logits = discriminator_forward(params, x, label=0,
                                   use_decoders=use_decoders,
                                   input_resolution=input_resolution)
    logits = jax.block_until_ready(logits)
    assert logits.shape == (2, 1, 1, 1), logits.shape
    assert bool(jnp.all(jnp.isfinite(logits)))
    print("KERNEL_OK")
</pallas_src>

<mosaic_0001>
module attributes {stable_mosaic.version = 11 : i64} {
  func.func @_mm_kernel(%arg0: i32, %arg1: i32, %arg2: i32, %arg3: memref<512x48xbf16, #tpu.memory_space<vmem>>, %arg4: memref<48x8xbf16, #tpu.memory_space<vmem>>, %arg5: memref<1x8xf32, #tpu.memory_space<vmem>>, %arg6: memref<512x8xf32, #tpu.memory_space<vmem>>, %arg7: memref<8x8xf32, #tpu.memory_space<vmem>>, %arg8: memref<8x8xf32, #tpu.memory_space<vmem>>) attributes {dimension_semantics = [#tpu.dimension_semantics<parallel>, #tpu.dimension_semantics<parallel>, #tpu.dimension_semantics<arbitrary>], iteration_bounds = array<i64: 64, 1, 1>, scalar_prefetch = 0 : i64, scratch_operands = 0 : i64, tpu.core_type = #tpu.core_type<tc>, window_params = [{transform_indices = @transform_0, window_bounds = array<i64: 512, 48>}, {transform_indices = @transform_1, window_bounds = array<i64: 48, 8>}, {transform_indices = @transform_2, window_bounds = array<i64: 1, 8>}, {transform_indices = @transform_3, window_bounds = array<i64: 512, 8>}, {transform_indices = @transform_4, window_bounds = array<i64: 8, 8>}, {transform_indices = @transform_5, window_bounds = array<i64: 8, 8>}]} {
    %c0 = arith.constant 0 : index
    %c0_0 = arith.constant 0 : index
    %0 = vector.load %arg3[%c0, %c0_0] : memref<512x48xbf16, #tpu.memory_space<vmem>>, vector<512x48xbf16>
    %c0_1 = arith.constant 0 : index
    %c0_2 = arith.constant 0 : index
    %1 = vector.load %arg4[%c0_1, %c0_2] : memref<48x8xbf16, #tpu.memory_space<vmem>>, vector<48x8xbf16>
    %cst = arith.constant dense<0.000000e+00> : vector<512x8xf32>
    %2 = tpu.matmul %0, %1, %cst {dimension_numbers = #tpu.dot_dimension_numbers<[1], [0], [0], [1], [0, 0, 1, 1], [], []>} : vector<512x48xbf16>, vector<48x8xbf16>, vector<512x8xf32> -> vector<512x8xf32>
    %cst_3 = arith.constant dense<0.000000e+00> : vector<8xf32>
    %3 = vector.multi_reduction <add>, %2, %cst_3 [0] : vector<512x8xf32> to vector<8xf32>
    %4 = vector.shape_cast %3 : vector<8xf32> to vector<1x8xf32>
    %5 = arith.mulf %2, %2 : vector<512x8xf32>
    %cst_4 = arith.constant dense<0.000000e+00> : vector<8xf32>
    %6 = vector.multi_reduction <add>, %5, %cst_4 [0] : vector<512x8xf32> to vector<8xf32>
    %7 = vector.shape_cast %6 : vector<8xf32> to vector<1x8xf32>
    %8 = vector.shape_cast %4 : vector<1x8xf32> to vector<1x8xf32>
    %9 = vector.broadcast %8 : vector<1x8xf32> to vector<8x8xf32>
    %c0_5 = arith.constant 0 : index
    %c0_6 = arith.constant 0 : index
    %10 = vector.load %arg7[%c0_5, %c0_6] : memref<8x8xf32, #tpu.memory_space<vmem>>, vector<8x8xf32>
    tpu.vector_store %arg7[%c0_5, %c0_6], %9 {strides = array<i32>} : memref<8x8xf32, #tpu.memory_space<vmem>>, vector<8x8xf32>,
    %11 = vector.shape_cast %7 : vector<1x8xf32> to vector<1x8xf32>
    %12 = vector.broadcast %11 : vector<1x8xf32> to vector<8x8xf32>
    %c0_7 = arith.constant 0 : index
    %c0_8 = arith.constant 0 : index
    %13 = vector.load %arg8[%c0_7, %c0_8] : memref<8x8xf32, #tpu.memory_space<vmem>>, vector<8x8xf32>
    tpu.vector_store %arg8[%c0_7, %c0_8], %12 {strides = array<i32>} : memref<8x8xf32, #tpu.memory_space<vmem>>, vector<8x8xf32>,
    %c0_9 = arith.constant 0 : index
    %c0_10 = arith.constant 0 : index
    %14 = vector.load %arg5[%c0_9, %c0_10] : memref<1x8xf32, #tpu.memory_space<vmem>>, vector<1x8xf32>
    %15 = vector.broadcast %14 : vector<1x8xf32> to vector<512x8xf32>
    %16 = arith.addf %2, %15 : vector<512x8xf32>
    %cst_11 = arith.constant 0.000000e+00 : f32
    %17 = vector.broadcast %cst_11 : f32 to vector<512x8xf32>
    %18 = arith.cmpf oge, %16, %17 : vector<512x8xf32>
    %cst_12 = arith.constant 1.000000e-01 : f32
    %19 = vector.broadcast %cst_12 : f32 to vector<512x8xf32>
    %20 = arith.mulf %19, %16 : vector<512x8xf32>
    %21 = arith.select %18, %16, %20 : vector<512x8xi1>, vector<512x8xf32>
    %c0_13 = arith.constant 0 : index
    %c0_14 = arith.constant 0 : index
    %22 = vector.load %arg6[%c0_13, %c0_14] : memref<512x8xf32, #tpu.memory_space<vmem>>, vector<512x8xf32>
    tpu.vector_store %arg6[%c0_13, %c0_14], %21 {strides = array<i32>} : memref<512x8xf32, #tpu.memory_space<vmem>>, vector<512x8xf32>,
    return
  }
  func.func @transform_0(%arg0: i32, %arg1: i32, %arg2: i32) -> (i32, i32) {
    %c0_i32 = arith.constant 0 : i32
    return %arg0, %arg2 : i32, i32
  }
  func.func @transform_1(%arg0: i32, %arg1: i32, %arg2: i32) -> (i32, i32) {
    %c0_i32 = arith.constant 0 : i32
    return %arg2, %arg1 : i32, i32
  }
  func.func @transform_2(%arg0: i32, %arg1: i32, %arg2: i32) -> (i32, i32) {
    %c0_i32 = arith.constant 0 : i32
    %c0_i32_0 = arith.constant 0 : i32
    return %c0_i32, %arg1 : i32, i32
  }
  func.func @transform_3(%arg0: i32, %arg1: i32, %arg2: i32) -> (i32, i32) {
    %c0_i32 = arith.constant 0 : i32
    return %arg0, %arg1 : i32, i32
  }
  func.func @transform_4(%arg0: i32, %arg1: i32, %arg2: i32) -> (i32, i32) {
    %c0_i32 = arith.constant 0 : i32
    return %arg0, %arg1 : i32, i32
  }
  func.func @transform_5(%arg0: i32, %arg1: i32, %arg2: i32) -> (i32, i32) {
    %c0_i32 = arith.constant 0 : i32
    return %arg0, %arg1 : i32, i32
  }
}

</mosaic_0001>

<llo_original>
// kernel: tpu_custom_call.1
$region0: #{tpu_custom_call.1}
  #allocation0 [shape = 'u32[]', space=smem, size = 0x4, offset = 0x4, fixed_abs, tag = 'smem constant byte address 0x4 - core index']
  #allocation1 [shape = 'u32[144,128]{1,0:T(1,128)}', space=vmem, size = 0x12000, scoped, tag = 'internal scratch']
  %s0 = inlined_call_operand.vmem [shape: bf16[32768,48], index: 0, kind: input, shape index: {}]
  %s1 = inlined_call_operand.vmem [shape: bf16[48,8], index: 1, kind: input, shape index: {}]
  %s2 = inlined_call_operand.vmem [shape: f32[1,8], index: 2, kind: input, shape index: {}]
  %s3 = inlined_call_operand.vmem [shape: f32[32768,8], index: 3, kind: output, shape index: {0}]
  %s4 = inlined_call_operand.vmem [shape: f32[512,8], index: 4, kind: output, shape index: {1}]
  %s5 = inlined_call_operand.vmem [shape: f32[512,8], index: 5, kind: output, shape index: {2}]
  %6 = xla_tuple %s3, %s4, %s5
  %s7 = sld [smem:[#allocation0]]
  $region61: #{tpu_custom_call.1} parent=0
    _
  %s9 = ssub.s32 1, %s7
  %s10 = scalar_select 0, %s9, %s7
  loop: start=0, step=1, limit=66
  $region2: #{tpu_custom_call.1} parent=0 // loop_pre_header
    _
  $region3: #{tpu_custom_call.1} parent=0 // loop_header
    %s12 = sphi 0, %s16
    %p13 = scmp.ge.s32.totalorder %s12, 66
    %s19 = sphi 0, %s38
    %s20 = sphi 0, %s34
    %s21 = sphi 0, %s30
    %s22 = sphi 0, %s19
    %s23 = sphi 0, %s20
    %s24 = sphi 0, %s21
    %s25 = sphi 0, %s22
    %s26 = sphi 0, %s23
    %s27 = sphi 0, %s24
    %s43 = sphi 0, %s45
    %s46 = sphi 0, %s43
    %s47 = sphi 0, %s46
    %s63 = sphi 0, %s47
    %s71 = sphi 0, %s73
    %s74 = sphi 0, %s71
    %s75 = sphi 0, %s74
    %s91 = sphi 0, %s75
    %s97 = sphi 0, %s99
    %s100 = sphi 0, %s97
    %s101 = sphi 0, %s100
    %s117 = sphi 0, %s101
    %s125 = sphi 0, %s127
    %s128 = sphi 0, %s125
    %s129 = sphi 0, %s128
    %s145 = sphi 0, %s129
    %s153 = sphi 0, %s155
    %s156 = sphi 0, %s153
    %s157 = sphi 0, %s156
    %s173 = sphi 0, %s157
    %s181 = sphi 0, %s183
    %s184 = sphi 0, %s181
    %s185 = sphi 0, %s184
    %s201 = sphi 0, %s185
  $region4: #{tpu_custom_call.1} parent=0 // loop_header_branch
    %15 = sbr.rel (%p13) target = $region8
  $region5: #{tpu_custom_call.1} parent=0 // loop_body
    %s17 = ssub.s32 %s12, 1
    %s18 = ssub.s32 %s12, 2
    %s28 = sadd.s32 1, %s21
    %p29 = scmp.ge.s32.totalorder %s28, 1
    %s30 = scalar_select %p29, 0, %s28
    %s31 = sadd.s32 1, %s20
    %s32 = scalar_select %p29, %s31, %s20
    %p33 = scmp.ge.s32.totalorder %s32, 1
    %s34 = scalar_select %p33, 0, %s32
    %s35 = sadd.s32 1, %s19
    %s36 = scalar_select %p33, %s35, %s19
    %p37 = scmp.ge.s32.totalorder %s36, 64
    %s38 = scalar_select %p37, 0, %s36
    %s39 = ssub.s32 %s19, %s38
    %s40 = ssub.s32 %s21, %s30
    %s41 = sor.u32 %s39, %s40
    %p42 = scmp.eq.s32.totalorder %s41, 0
    %s44 = sadd.s32 %s43, 1
    %s45 = scalar_select %p42, %s43, %s44
    %p48 = pneg %p42
    %p49 = scmp.eq.s32.totalorder %s12, 63
    %p50 = por %p48, %p49
    %p51 = scmp.ne.s32.totalorder %s43, %s46
    %p52 = scmp.eq.s32.totalorder %s12, 0
    %p53 = por %p51, %p52
    %p54 = scmp.ne.s32.totalorder %s43, %s46
    %p55 = scmp.eq.s32.totalorder %s17, 63
    %p56 = por %p54, %p55
    %p57 = scmp.ne.s32.totalorder %s46, %s47
    %p58 = scmp.eq.s32.totalorder %s17, 0
    %p59 = por %p57, %p58
    %p60 = scmp.ne.s32.totalorder %s46, %s47
    %p61 = scmp.eq.s32.totalorder %s18, 63
    %p62 = por %p60, %p61
    %p64 = scmp.ne.s32.totalorder %s47, %s63
    %p65 = scmp.eq.s32.totalorder %s18, 0
    %p66 = por %p64, %p65
    %s67 = ssub.s32 %s21, %s30
    %s68 = ssub.s32 %s20, %s34
    %s69 = sor.u32 %s67, %s68
    %p70 = scmp.eq.s32.totalorder %s69, 0
    %s72 = sadd.s32 %s71, 1
    %s73 = scalar_select %p70, %s71, %s72
    %p76 = pneg %p70
    %p77 = scmp.eq.s32.totalorder %s12, 63
    %p78 = por %p76, %p77
    %p79 = scmp.ne.s32.totalorder %s71, %s74
    %p80 = scmp.eq.s32.totalorder %s12, 0
    %p81 = por %p79, %p80
    %p82 = scmp.ne.s32.totalorder %s71, %s74
    %p83 = scmp.eq.s32.totalorder %s17, 63
    %p84 = por %p82, %p83
    %p85 = scmp.ne.s32.totalorder %s74, %s75
    %p86 = scmp.eq.s32.totalorder %s17, 0
    %p87 = por %p85, %p86
    %p88 = scmp.ne.s32.totalorder %s74, %s75
    %p89 = scmp.eq.s32.totalorder %s18, 63
    %p90 = por %p88, %p89
    %p92 = scmp.ne.s32.totalorder %s75, %s91
    %p93 = scmp.eq.s32.totalorder %s18, 0
    %p94 = por %p92, %p93
    %s95 = ssub.s32 %s20, %s34
    %p96 = scmp.eq.s32.totalorder %s95, 0
    %s98 = sadd.s32 %s97, 1
    %s99 = scalar_select %p96, %s97, %s98
    %p102 = pneg %p96
    %p103 = scmp.eq.s32.totalorder %s12, 63
    %p104 = por %p102, %p103
    %p105 = scmp.ne.s32.totalorder %s97, %s100
    %p106 = scmp.eq.s32.totalorder %s12, 0
    %p107 = por %p105, %p106
    %p108 = scmp.ne.s32.totalorder %s97, %s100
    %p109 = scmp.eq.s32.totalorder %s17, 63
    %p110 = por %p108, %p109
    %p111 = scmp.ne.s32.totalorder %s100, %s101
    %p112 = scmp.eq.s32.totalorder %s17, 0
    %p113 = por %p111, %p112
    %p114 = scmp.ne.s32.totalorder %s100, %s101
    %p115 = scmp.eq.s32.totalorder %s18, 63
    %p116 = por %p114, %p115
    %p118 = scmp.ne.s32.totalorder %s101, %s117
    %p119 = scmp.eq.s32.totalorder %s18, 0
    %p120 = por %p118, %p119
    %s121 = ssub.s32 %s19, %s38
    %s122 = ssub.s32 %s20, %s34
    %s123 = sor.u32 %s121, %s122
    %p124 = scmp.eq.s32.totalorder %s123, 0
    %s126 = sadd.s32 %s125, 1
    %s127 = scalar_select %p124, %s125, %s126
    %p130 = pneg %p124
    %p131 = scmp.eq.s32.totalorder %s12, 63
    %p132 = por %p130, %p131
    %p133 = scmp.ne.s32.totalorder %s125, %s128
    %p134 = scmp.eq.s32.totalorder %s12, 0
    %p135 = por %p133, %p134
    %p136 = scmp.ne.s32.totalorder %s125, %s128
    %p137 = scmp.eq.s32.totalorder %s17, 63
    %p138 = por %p136, %p137
    %p139 = scmp.ne.s32.totalorder %s128, %s129
    %p140 = scmp.eq.s32.totalorder %s17, 0
    %p141 = por %p139, %p140
    %p142 = scmp.ne.s32.totalorder %s128, %s129
    %p143 = scmp.eq.s32.totalorder %s18, 63
    %p144 = por %p142, %p143
    %p146 = scmp.ne.s32.totalorder %s129, %s145
    %p147 = scmp.eq.s32.totalorder %s18, 0
    %p148 = por %p146, %p147
    %s149 = ssub.s32 %s19, %s38
    %s150 = ssub.s32 %s20, %s34
    %s151 = sor.u32 %s149, %s150
    %p152 = scmp.eq.s32.totalorder %s151, 0
    %s154 = sadd.s32 %s153, 1
    %s155 = scalar_select %p152, %s153, %s154
    %p158 = pneg %p152
    %p159 = scmp.eq.s32.totalorder %s12, 63
    %p160 = por %p158, %p159
    %p161 = scmp.ne.s32.totalorder %s153, %s156
    %p162 = scmp.eq.s32.totalorder %s12, 0
    %p163 = por %p161, %p162
    %p164 = scmp.ne.s32.totalorder %s153, %s156
    %p165 = scmp.eq.s32.totalorder %s17, 63
    %p166 = por %p164, %p165
    %p167 = scmp.ne.s32.totalorder %s156, %s157
    %p168 = scmp.eq.s32.totalorder %s17, 0
    %p169 = por %p167, %p168
    %p170 = scmp.ne.s32.totalorder %s156, %s157
    %p171 = scmp.eq.s32.totalorder %s18, 63
    %p172 = por %p170, %p171
    %p174 = scmp.ne.s32.totalorder %s157, %s173
    %p175 = scmp.eq.s32.totalorder %s18, 0
    %p176 = por %p174, %p175
    %s177 = ssub.s32 %s19, %s38
    %s178 = ssub.s32 %s20, %s34
    %s179 = sor.u32 %s177, %s178
    %p180 = scmp.eq.s32.totalorder %s179, 0
    %s182 = sadd.s32 %s181, 1
    %s183 = scalar_select %p180, %s181, %s182
    %p186 = pneg %p180
    %p187 = scmp.eq.s32.totalorder %s12, 63
    %p188 = por %p186, %p187
    %p189 = scmp.ne.s32.totalorder %s181, %s184
    %p190 = scmp.eq.s32.totalorder %s12, 0
    %p191 = por %p189, %p190
    %p192 = scmp.ne.s32.totalorder %s181, %s184
    %p193 = scmp.eq.s32.totalorder %s17, 63
    %p194 = por %p192, %p193
    %p195 = scmp.ne.s32.totalorder %s184, %s185
    %p196 = scmp.eq.s32.totalorder %s17, 0
    %p197 = por %p195, %p196
    %p198 = scmp.ne.s32.totalorder %s184, %s185
    %p199 = scmp.eq.s32.totalorder %s18, 63
    %p200 = por %p198, %p199
    %p202 = scmp.ne.s32.totalorder %s185, %s201
    %p203 = scmp.eq.s32.totalorder %s18, 0
    %p204 = por %p202, %p203
    %p205 = scmp.le.s32.totalorder 1, %s12
    %p206 = scmp.lt.s32.totalorder %s12, 65
    %p207 = pnand %p205, %p206
    %p208 = pneg %p207
    // Predicated region
    $region9: #{tpu_custom_call.1} parent=5 // pred_check
      _
    $region10: #{tpu_custom_call.1} parent=5 // pred_check_branch
      %210 = sbr.rel (%p207) target = $region12
    $region11: #{tpu_custom_call.1} parent=5 // pred_region
      %s211 = ssub.s32 %s12, 1
      // Predicated region
      $region13: #{tpu_custom_call.1} parent=11 // pred_check
        %p212 = pneg %p87
      $region14: #{tpu_custom_call.1} parent=11 // pred_check_branch
        %214 = sbr.rel (%p212) target = $region16
      $region15: #{tpu_custom_call.1} parent=11 // pred_region
        %s215 = smul.u32 6, %s24
        %p216 = scmp.lt.s32.totalorder %s215, 5
        %s217 = scalar_select %p216, %s215, 5
        %p218 = scmp.lt.s32.totalorder %s23, 0
        %s219 = scalar_select %p218, %s23, 0
        %s220 = sadd.s32 %s219, %s217
        %s221 = smul.addr %s220, 4
        %s222 = scalar_lea.vmem %s1, %s221
        %s223 = smul.u32 6, %s24
      $region16: #{tpu_custom_call.1} parent=11 // pred_fallthru
        _
      // Predicated region
      $region17: #{tpu_custom_call.1} parent=11 // pred_check
        %p224 = pneg %p113
      $region18: #{tpu_custom_call.1} parent=11 // pred_check_branch
        %226 = sbr.rel (%p224) target = $region20
      $region19: #{tpu_custom_call.1} parent=11 // pred_region
        %p227 = scmp.lt.s32.totalorder %s23, 0
        %s228 = scalar_select %p227, %s23, 0
        %s229 = scalar_lea.vmem %s2, %s228
      $region20: #{tpu_custom_call.1} parent=11 // pred_fallthru
        _
    $region12: #{tpu_custom_call.1} parent=5 // pred_fallthru
      _
    %p230 = scmp.lt.s32.totalorder %s12, 64
    // Predicated region
    $region21: #{tpu_custom_call.1} parent=5 // pred_check
      %p231 = pneg %p230
    $region22: #{tpu_custom_call.1} parent=5 // pred_check_branch
      %233 = sbr.rel (%p231) target = $region24
    $region23: #{tpu_custom_call.1} parent=5 // pred_region
      // Predicated region
      $region25: #{tpu_custom_call.1} parent=23 // pred_check
        %p234 = pneg %p53
      $region26: #{tpu_custom_call.1} parent=23 // pred_check_branch
        %236 = sbr.rel (%p234) target = $region28
      $region27: #{tpu_custom_call.1} parent=23 // pred_region
        %s237 = smul.u32 64, %s19
        %p238 = scmp.lt.s32.totalorder %s237, 4095
        %s239 = scalar_select %p238, %s237, 4095
        %p240 = scmp.lt.s32.totalorder %s21, 0
        %s241 = scalar_select %p240, %s21, 0
        %s242 = sadd.s32 %s241, %s239
        %s243 = smul.addr %s242, 4
        %s244 = scalar_lea.vmem %s0, %s243
        %s245 = smul.u32 64, %s19
      $region28: #{tpu_custom_call.1} parent=23 // pred_fallthru
        _
    $region24: #{tpu_custom_call.1} parent=5 // pred_fallthru
      _
    %p246 = scmp.le.s32.totalorder 1, %s12
    %p247 = scmp.lt.s32.totalorder %s12, 65
    %p248 = pnand %p246, %p247
    %p249 = pneg %p248
    // Predicated region
    $region29: #{tpu_custom_call.1} parent=5 // pred_check
      _
    $region30: #{tpu_custom_call.1} parent=5 // pred_check_branch
      %251 = sbr.rel (%p248) target = $region32
    $region31: #{tpu_custom_call.1} parent=5 // pred_region
      %s252 = ssub.s32 %s12, 1
      %s253 = smul.u32 64, %s22
      %p254 = scmp.lt.s32.totalorder %s253, 4095
      %s255 = scalar_select %p254, %s253, 4095
      %p256 = scmp.lt.s32.totalorder %s24, 0
      %s257 = scalar_select %p256, %s24, 0
      %s258 = sadd.s32 %s257, %s255
      %s259 = smul.addr %s258, 4
      %s260 = scalar_lea.vmem %s0, %s259
      %p261 = pneg %p59
      %p262 = pneg %p56
      %s263 = smul.u32 6, %s24
      %p264 = scmp.lt.s32.totalorder %s263, 5
      %s265 = scalar_select %p264, %s263, 5
      %p266 = scmp.lt.s32.totalorder %s23, 0
      %s267 = scalar_select %p266, %s23, 0
      %s268 = sadd.s32 %s267, %s265
      %s269 = smul.addr %s268, 4
      %s270 = scalar_lea.vmem %s1, %s269
      %p271 = pneg %p87
      %p272 = pneg %p84
      %p273 = scmp.lt.s32.totalorder %s23, 0
      %s274 = scalar_select %p273, %s23, 0
      %s275 = scalar_lea.vmem %s2, %s274
      %p276 = pneg %p113
      %p277 = pneg %p110
      %p278 = pneg %p141
      %p279 = pneg %p138
      %s280 = smul.u32 64, %s22
      %p281 = scmp.lt.s32.totalorder %s280, 4095
      %s282 = scalar_select %p281, %s280, 4095
      %p283 = scmp.lt.s32.totalorder %s23, 0
      %s284 = scalar_select %p283, %s23, 0
      %s285 = sadd.s32 %s284, %s282
      %s286 = smul.addr %s285, 8
      %s287 = scalar_lea.vmem %s3, %s286
      %p288 = pneg %p169
      %p289 = pneg %p166
      %p290 = scmp.lt.s32.totalorder %s22, 63
      %s291 = scalar_select %p290, %s22, 63
      %p292 = scmp.lt.s32.totalorder %s23, 0
      %s293 = scalar_select %p292, %s23, 0
      %s294 = sadd.s32 %s293, %s291
      %s295 = smul.addr %s294, 8
      %s296 = scalar_lea.vmem %s4, %s295
      %p297 = pneg %p197
      %p298 = pneg %p194
      %p299 = scmp.lt.s32.totalorder %s22, 63
      %s300 = scalar_select %p299, %s22, 63
      %p301 = scmp.lt.s32.totalorder %s23, 0
      %s302 = scalar_select %p301, %s23, 0
      %s303 = sadd.s32 %s302, %s300
      %s304 = smul.addr %s303, 8
      %s305 = scalar_lea.vmem %s5, %s304
      %s306 = smul.u32 64, %s22
      %p307 = scmp.lt.s32.totalorder %s306, 4095
      %s308 = scalar_select %p307, %s306, 4095
      %p309 = scmp.lt.s32.totalorder %s24, 0
      %s310 = scalar_select %p309, %s24, 0
      %s311 = sadd.s32 %s310, %s308
      %s312 = smul.addr %s311, 4
      %s313 = scalar_lea.vmem %s0, %s312
      %s314 = smul.u32 64, %s22
      %s315 = smul.u32 6, %s24
      %p316 = scmp.lt.s32.totalorder %s315, 5
      %s317 = scalar_select %p316, %s315, 5
      %p318 = scmp.lt.s32.totalorder %s23, 0
      %s319 = scalar_select %p318, %s23, 0
      %s320 = sadd.s32 %s319, %s317
      %s321 = smul.addr %s320, 4
      %s322 = scalar_lea.vmem %s1, %s321
      %s323 = smul.u32 6, %s24
      %p324 = scmp.lt.s32.totalorder %s23, 0
      %s325 = scalar_select %p324, %s23, 0
      %s326 = scalar_lea.vmem %s2, %s325
      %s327 = smul.u32 64, %s22
      %p328 = scmp.lt.s32.totalorder %s327, 4095
      %s329 = scalar_select %p328, %s327, 4095
      %p330 = scmp.lt.s32.totalorder %s23, 0
      %s331 = scalar_select %p330, %s23, 0
      %s332 = sadd.s32 %s331, %s329
      %s333 = smul.addr %s332, 8
      %s334 = scalar_lea.vmem %s3, %s333
      %s335 = smul.u32 64, %s22
      %p336 = scmp.lt.s32.totalorder %s22, 63
      %s337 = scalar_select %p336, %s22, 63
      %p338 = scmp.lt.s32.totalorder %s23, 0
      %s339 = scalar_select %p338, %s23, 0
      %s340 = sadd.s32 %s339, %s337
      %s341 = smul.addr %s340, 8
      %s342 = scalar_lea.vmem %s4, %s341
      %p343 = scmp.lt.s32.totalorder %s22, 63
      %s344 = scalar_select %p343, %s22, 63
      %p345 = scmp.lt.s32.totalorder %s23, 0
      %s346 = scalar_select %p345, %s23, 0
      %s347 = sadd.s32 %s346, %s344
      %s348 = smul.addr %s347, 8
      %s349 = scalar_lea.vmem %s5, %s348
      %v351 = vld [vmem:[%s313] sm:$0xf]
      %v352 = vld [vmem:[%s313 + $0x4] sm:$0xf]
      %v353 = vld [vmem:[%s313 + $0x8] sm:$0xf]
      %v354 = vld [vmem:[%s313 + $0xc] sm:$0xf]
      %v355 = vld [vmem:[%s313 + $0x10] sm:$0xf]
      %v356 = vld [vmem:[%s313 + $0x14] sm:$0xf]
      %v357 = vld [vmem:[%s313 + $0x18] sm:$0xf]
      %v358 = vld [vmem:[%s313 + $0x1c] sm:$0xf]
      %v359 = vld [vmem:[%s313 + $0x20] sm:$0xf]
      %v360 = vld [vmem:[%s313 + $0x24] sm:$0xf]
      %v361 = vld [vmem:[%s313 + $0x28] sm:$0xf]
      %v362 = vld [vmem:[%s313 + $0x2c] sm:$0xf]
      %v363 = vld [vmem:[%s313 + $0x30] sm:$0xf]
      %v364 = vld [vmem:[%s313 + $0x34] sm:$0xf]
      %v365 = vld [vmem:[%s313 + $0x38] sm:$0xf]
      %v366 = vld [vmem:[%s313 + $0x3c] sm:$0xf]
      %v367 = vld [vmem:[%s313 + $0x40] sm:$0xf]
      %v368 = vld [vmem:[%s313 + $0x44] sm:$0xf]
      %v369 = vld [vmem:[%s313 + $0x48] sm:$0xf]
      %v370 = vld [vmem:[%s313 + $0x4c] sm:$0xf]
      %v371 = vld [vmem:[%s313 + $0x50] sm:$0xf]
      %v372 = vld [vmem:[%s313 + $0x54] sm:$0xf]
      %v373 = vld [vmem:[%s313 + $0x58] sm:$0xf]
      %v374 = vld [vmem:[%s313 + $0x5c] sm:$0xf]
      %v375 = vld [vmem:[%s313 + $0x60] sm:$0xf]
      %v376 = vld [vmem:[%s313 + $0x64] sm:$0xf]
      %v377 = vld [vmem:[%s313 + $0x68] sm:$0xf]
      %v378 = vld [vmem:[%s313 + $0x6c] sm:$0xf]
      %v379 = vld [vmem:[%s313 + $0x70] sm:$0xf]
      %v380 = vld [vmem:[%s313 + $0x74] sm:$0xf]
      %v381 = vld [vmem:[%s313 + $0x78] sm:$0xf]
      %v382 = vld [vmem:[%s313 + $0x7c] sm:$0xf]
      %v383 = vld [vmem:[%s313 + $0x80] sm:$0xf]
      %v384 = vld [vmem:[%s313 + $0x84] sm:$0xf]
      %v385 = vld [vmem:[%s313 + $0x88] sm:$0xf]
      %v386 = vld [vmem:[%s313 + $0x8c] sm:$0xf]
      %v387 = vld [vmem:[%s313 + $0x90] sm:$0xf]
      %v388 = vld [vmem:[%s313 + $0x94] sm:$0xf]
      %v389 = vld [vmem:[%s313 + $0x98] sm:$0xf]
      %v390 = vld [vmem:[%s313 + $0x9c] sm:$0xf]
      %v391 = vld [vmem:[%s313 + $0xa0] sm:$0xf]
      %v392 = vld [vmem:[%s313 + $0xa4] sm:$0xf]
      %v393 = vld [vmem:[%s313 + $0xa8] sm:$0xf]
      %v394 = vld [vmem:[%s313 + $0xac] sm:$0xf]
      %v395 = vld [vmem:[%s313 + $0xb0] sm:$0xf]
      %v396 = vld [vmem:[%s313 + $0xb4] sm:$0xf]
      %v397 = vld [vmem:[%s313 + $0xb8] sm:$0xf]
      %v398 = vld [vmem:[%s313 + $0xbc] sm:$0xf]
      %v399 = vld [vmem:[%s313 + $0xc0] sm:$0xf]
      %v400 = vld [vmem:[%s313 + $0xc4] sm:$0xf]
      %v401 = vld [vmem:[%s313 + $0xc8] sm:$0xf]
      %v402 = vld [vmem:[%s313 + $0xcc] sm:$0xf]
      %v403 = vld [vmem:[%s313 + $0xd0] sm:$0xf]
      %v404 = vld [vmem:[%s313 + $0xd4] sm:$0xf]
      %v405 = vld [vmem:[%s313 + $0xd8] sm:$0xf]
      %v406 = vld [vmem:[%s313 + $0xdc] sm:$0xf]
      %v407 = vld [vmem:[%s313 + $0xe0] sm:$0xf]
      %v408 = vld [vmem:[%s313 + $0xe4] sm:$0xf]
      %v409 = vld [vmem:[%s313 + $0xe8] sm:$0xf]
      %v410 = vld [vmem:[%s313 + $0xec] sm:$0xf]
      %v411 = vld [vmem:[%s313 + $0xf0] sm:$0xf]
      %v412 = vld [vmem:[%s313 + $0xf4] sm:$0xf]
      %v413 = vld [vmem:[%s313 + $0xf8] sm:$0xf]
      %v414 = vld [vmem:[%s313 + $0xfc] sm:$0xf]
      %v415 = vld [vmem:[%s322] sm:$0xf]
      %v416 = vld [vmem:[%s322 + $0x4] sm:$0xf]
      %v417 = vld [vmem:[%s322 + $0x8] sm:$0xf]
      %v418 = vld [vmem:[%s322 + $0xc] sm:$0xf]
      %v419 = vld [vmem:[%s322 + $0x10] sm:$0xf]
      %v420 = vld [vmem:[%s322 + $0x14] sm:$0xf]
      %v485 = vunpack.c.l.b16 %v351
      %v486 = vunpack.c.l.b16 %v352
      %v487 = vunpack.c.l.b16 %v353
      %v488 = vunpack.c.l.b16 %v354
      %v489 = vunpack.c.l.b16 %v355
      %v490 = vunpack.c.l.b16 %v356
      %v491 = vunpack.c.l.b16 %v357
      %v492 = vunpack.c.l.b16 %v358
      %v493 = vunpack.c.l.b16 %v359
      %v494 = vunpack.c.l.b16 %v360
      %v495 = vunpack.c.l.b16 %v361
      %v496 = vunpack.c.l.b16 %v362
      %v497 = vunpack.c.l.b16 %v363
      %v498 = vunpack.c.l.b16 %v364
      %v499 = vunpack.c.l.b16 %v365
      %v500 = vunpack.c.l.b16 %v366
      %v501 = vunpack.c.l.b16 %v367
      %v502 = vunpack.c.l.b16 %v368
      %v503 = vunpack.c.l.b16 %v369
      %v504 = vunpack.c.l.b16 %v370
      %v505 = vunpack.c.l.b16 %v371
      %v506 = vunpack.c.l.b16 %v372
      %v507 = vunpack.c.l.b16 %v373
      %v508 = vunpack.c.l.b16 %v374
      %v509 = vunpack.c.l.b16 %v375
      %v510 = vunpack.c.l.b16 %v376
      %v511 = vunpack.c.l.b16 %v377
      %v512 = vunpack.c.l.b16 %v378
      %v513 = vunpack.c.l.b16 %v379
      %v514 = vunpack.c.l.b16 %v380
      %v515 = vunpack.c.l.b16 %v381
      %v516 = vunpack.c.l.b16 %v382
      %v517 = vunpack.c.l.b16 %v383
      %v518 = vunpack.c.l.b16 %v384
      %v519 = vunpack.c.l.b16 %v385
      %v520 = vunpack.c.l.b16 %v386
      %v521 = vunpack.c.l.b16 %v387
      %v522 = vunpack.c.l.b16 %v388
      %v523 = vunpack.c.l.b16 %v389
      %v524 = vunpack.c.l.b16 %v390
      %v525 = vunpack.c.l.b16 %v391
      %v526 = vunpack.c.l.b16 %v392
      %v527 = vunpack.c.l.b16 %v393
      %v528 = vunpack.c.l.b16 %v394
      %v529 = vunpack.c.l.b16 %v395
      %v530 = vunpack.c.l.b16 %v396
      %v531 = vunpack.c.l.b16 %v397
      %v532 = vunpack.c.l.b16 %v398
      %v533 = vunpack.c.l.b16 %v399
      %v534 = vunpack.c.l.b16 %v400
      %v535 = vunpack.c.l.b16 %v401
      %v536 = vunpack.c.l.b16 %v402
      %v537 = vunpack.c.l.b16 %v403
      %v538 = vunpack.c.l.b16 %v404
      %v539 = vunpack.c.l.b16 %v405
      %v540 = vunpack.c.l.b16 %v406
      %v541 = vunpack.c.l.b16 %v407
      %v542 = vunpack.c.l.b16 %v408
      %v543 = vunpack.c.l.b16 %v409
      %v544 = vunpack.c.l.b16 %v410
      %v545 = vunpack.c.l.b16 %v411
      %v546 = vunpack.c.l.b16 %v412
      %v547 = vunpack.c.l.b16 %v413
      %v548 = vunpack.c.l.b16 %v414
      %v549 = vpack.c.b16 %v486, %v485
      %v550 = vpack.c.b16 %v488, %v487
      %v551 = vpack.c.b16 %v490, %v489
      %v552 = vpack.c.b16 %v492, %v491
      %v553 = vpack.c.b16 %v494, %v493
      %v554 = vpack.c.b16 %v496, %v495
      %v555 = vpack.c.b16 %v498, %v497
      %v556 = vpack.c.b16 %v500, %v499
      %v557 = vpack.c.b16 %v502, %v501
      %v558 = vpack.c.b16 %v504, %v503
      %v559 = vpack.c.b16 %v506, %v505
      %v560 = vpack.c.b16 %v508, %v507
      %v561 = vpack.c.b16 %v510, %v509
      %v562 = vpack.c.b16 %v512, %v511
      %v563 = vpack.c.b16 %v514, %v513
      %v564 = vpack.c.b16 %v516, %v515
      %v565 = vpack.c.b16 %v518, %v517
      %v566 = vpack.c.b16 %v520, %v519
      %v567 = vpack.c.b16 %v522, %v521
      %v568 = vpack.c.b16 %v524, %v523
      %v569 = vpack.c.b16 %v526, %v525
      %v570 = vpack.c.b16 %v528, %v527
      %v571 = vpack.c.b16 %v530, %v529
      %v572 = vpack.c.b16 %v532, %v531
      %v573 = vpack.c.b16 %v534, %v533
      %v574 = vpack.c.b16 %v536, %v535
      %v575 = vpack.c.b16 %v538, %v537
      %v576 = vpack.c.b16 %v540, %v539
      %v577 = vpack.c.b16 %v542, %v541
      %v578 = vpack.c.b16 %v544, %v543
      %v579 = vpack.c.b16 %v546, %v545
      %v580 = vpack.c.b16 %v548, %v547
      %v587 = vunpack.c.l.b16 %v415
      %v588 = vunpack.c.l.b16 %v416
      %v589 = vunpack.c.l.b16 %v417
      %v590 = vunpack.c.l.b16 %v418
      %v591 = vunpack.c.l.b16 %v419
      %v592 = vunpack.c.l.b16 %v420
      %v593 = vpack.c.b16 %v588, %v587
      %v594 = vpack.c.b16 %v590, %v589
      %v595 = vpack.c.b16 %v592, %v591
      %vm599 = vcmask 392192
      %v601 = vsel %vm599, %v549, 0
      %v604 = vsel %vm599, %v550, 0
      %v607 = vsel %vm599, %v551, 0
      %v610 = vsel %vm599, %v552, 0
      %v613 = vsel %vm599, %v553, 0
      %v616 = vsel %vm599, %v554, 0
      %v619 = vsel %vm599, %v555, 0
      %v622 = vsel %vm599, %v556, 0
      %v625 = vsel %vm599, %v557, 0
      %v628 = vsel %vm599, %v558, 0
      %v631 = vsel %vm599, %v559, 0
      %v634 = vsel %vm599, %v560, 0
      %v637 = vsel %vm599, %v561, 0
      %v640 = vsel %vm599, %v562, 0
      %v643 = vsel %vm599, %v563, 0
      %v646 = vsel %vm599, %v564, 0
      %v649 = vsel %vm599, %v565, 0
      %v652 = vsel %vm599, %v566, 0
      %v655 = vsel %vm599, %v567, 0
      %v658 = vsel %vm599, %v568, 0
      %v661 = vsel %vm599, %v569, 0
      %v664 = vsel %vm599, %v570, 0
      %v667 = vsel %vm599, %v571, 0
      %v670 = vsel %vm599, %v572, 0
      %v673 = vsel %vm599, %v573, 0
      %v676 = vsel %vm599, %v574, 0
      %v679 = vsel %vm599, %v575, 0
      %v682 = vsel %vm599, %v576, 0
      %v685 = vsel %vm599, %v577, 0
      %v688 = vsel %vm599, %v578, 0
      %v691 = vsel %vm599, %v579, 0
      %v694 = vsel %vm599, %v580, 0
      %696 = vmatprep.subr.bf16.mxu0 0
      %697 = vmatpush1.bf16.msra.mxu0 %v593
      %698 = vmatprep.subr.bf16.mxu0 0
      %699 = vmatpush1.bf16.msra.mxu0 %v594
      %700 = vmatprep.subr.bf16.mxu0 0
      %701 = vmatpush1.bf16.msra.mxu0 %v595
      %702 = vmatprep.subr.bf16.mxu0 0
      %703 = vmatpush1.bf16.msra.mxu0 0
      %704 = vmatprep.subr.bf16.mxu0 0
      %705 = vmatpush1.bf16.msra.mxu0 0
      %706 = vmatprep.subr.bf16.mxu0 0
      %707 = vmatpush1.bf16.msra.mxu0 0
      %708 = vmatprep.subr.bf16.mxu0 0
      %709 = vmatpush1.bf16.msra.mxu0 0
      %710 = vmatprep.subr.bf16.mxu0 0
      %711 = vmatpush1.bf16.msra.mxu0 0
      %712 = vmatprep.subr.bf16.mxu0 0
      %713 = vmatpush1.bf16.msra.mxu0 0
      %714 = vmatprep.subr.bf16.mxu0 0
      %715 = vmatpush1.bf16.msra.mxu0 0
      %716 = vmatprep.subr.bf16.mxu0 0
      %717 = vmatpush1.bf16.msra.mxu0 0
      %718 = vmatprep.subr.bf16.mxu0 0
      %719 = vmatpush1.bf16.msra.mxu0 0
      %720 = vmatprep.subr.bf16.mxu0 0
      %721 = vmatpush1.bf16.msra.mxu0 0
      %722 = vmatprep.subr.bf16.mxu0 0
      %723 = vmatpush1.bf16.msra.mxu0 0
      %724 = vmatprep.subr.bf16.mxu0 0
      %725 = vmatpush1.bf16.msra.mxu0 0
      %726 = vmatprep.subr.bf16.mxu0 0
      %727 = vmatpush1.bf16.msra.mxu0 0
      %728 = vmatprep.mubr.bf16.mxu0 0
      %729 = vmatmul.mubr.bf16.gmra.mrb[0].mxu0 %v601
      %v730 = vpop.f32.mrb[0].mxu0
      %v731 = vadd.f32 0.0, %v730
      %v732 = vpop.f32.mrb[0].mxu0
      %v733 = vpop.f32.mrb[0].mxu0
      %v734 = vadd.f32 0.0, %v733
      %v735 = vpop.f32.mrb[0].mxu0
      %736 = vmatprep.mubr.bf16.mxu0 0
      %737 = vmatmul.mubr.bf16.gmra.mrb[0].mxu0 %v604
      %v738 = vpop.f32.mrb[0].mxu0
      %v739 = vadd.f32 0.0, %v738
      %v740 = vpop.f32.mrb[0].mxu0
      %v741 = vpop.f32.mrb[0].mxu0
      %v742 = vadd.f32 0.0, %v741
      %v743 = vpop.f32.mrb[0].mxu0
      %744 = vmatprep.mubr.bf16.mxu0 0
      %745 = vmatmul.mubr.bf16.gmra.mrb[0].mxu0 %v607
      %v746 = vpop.f32.mrb[0].mxu0
      %v747 = vadd.f32 0.0, %v746
      %v748 = vpop.f32.mrb[0].mxu0
      %v749 = vpop.f32.mrb[0].mxu0
      %v750 = vadd.f32 0.0, %v749
      %v751 = vpop.f32.mrb[0].mxu0
      %752 = vmatprep.mubr.bf16.mxu0 0
      %753 = vmatmul.mubr.bf16.gmra.mrb[0].mxu0 %v610
      %v754 = vpop.f32.mrb[0].mxu0
      %v755 = vadd.f32 0.0, %v754
      %v756 = vpop.f32.mrb[0].mxu0
      %v757 = vpop.f32.mrb[0].mxu0
      %v758 = vadd.f32 0.0, %v757
      %v759 = vpop.f32.mrb[0].mxu0
      %760 = vmatprep.mubr.bf16.mxu0 0
      %761 = vmatmul.mubr.bf16.gmra.mrb[0].mxu0 %v613
      %v762 = vpop.f32.mrb[0].mxu0
      %v763 = vadd.f32 0.0, %v762
      %v764 = vpop.f32.mrb[0].mxu0
      %v765 = vpop.f32.mrb[0].mxu0
      %v766 = vadd.f32 0.0, %v765
      %v767 = vpop.f32.mrb[0].mxu0
      %768 = vmatprep.mubr.bf16.mxu0 0
      %769 = vmatmul.mubr.bf16.gmra.mrb[0].mxu0 %v616
      %v770 = vpop.f32.mrb[0].mxu0
      %v771 = vadd.f32 0.0, %v770
      %v772 = vpop.f32.mrb[0].mxu0
      %v773 = vpop.f32.mrb[0].mxu0
      %v774 = vadd.f32 0.0, %v773
      %v775 = vpop.f32.mrb[0].mxu0
      %776 = vmatprep.mubr.bf16.mxu0 0
      %777 = vmatmul.mubr.bf16.gmra.mrb[0].mxu0 %v619
      %v778 = vpop.f32.mrb[0].mxu0
      %v779 = vadd.f32 0.0, %v778
      %v780 = vpop.f32.mrb[0].mxu0
      %v781 = vpop.f32.mrb[0].mxu0
      %v782 = vadd.f32 0.0, %v781
      %v783 = vpop.f32.mrb[0].mxu0
      %784 = vmatprep.mubr.bf16.mxu0 0
      %785 = vmatmul.mubr.bf16.gmra.mrb[0].mxu0 %v622
      %v786 = vpop.f32.mrb[0].mxu0
      %v787 = vadd.f32 0.0, %v786
      %v788 = vpop.f32.mrb[0].mxu0
      %v789 = vpop.f32.mrb[0].mxu0
      %v790 = vadd.f32 0.0, %v789
      %v791 = vpop.f32.mrb[0].mxu0
      %792 = vmatprep.mubr.bf16.mxu0 0
      %793 = vmatmul.mubr.bf16.gmra.mrb[0].mxu0 %v625
      %v794 = vpop.f32.mrb[0].mxu0
      %v795 = vadd.f32 0.0, %v794
      %v796 = vpop.f32.mrb[0].mxu0
      %v797 = vpop.f32.mrb[0].mxu0
      %v798 = vadd.f32 0.0, %v797
      %v799 = vpop.f32.mrb[0].mxu0
      %800 = vmatprep.mubr.bf16.mxu0 0
      %801 = vmatmul.mubr.bf16.gmra.mrb[0].mxu0 %v628
      %v802 = vpop.f32.mrb[0].mxu0
      %v803 = vadd.f32 0.0, %v802
      %v804 = vpop.f32.mrb[0].mxu0
      %v805 = vpop.f32.mrb[0].mxu0
      %v806 = vadd.f32 0.0, %v805
      %v807 = vpop.f32.mrb[0].mxu0
      %808 = vmatprep.mubr.bf16.mxu0 0
      %809 = vmatmul.mubr.bf16.gmra.mrb[0].mxu0 %v631
      %v810 = vpop.f32.mrb[0].mxu0
      %v811 = vadd.f32 0.0, %v810
      %v812 = vpop.f32.mrb[0].mxu0
      %v813 = vpop.f32.mrb[0].mxu0
      %v814 = vadd.f32 0.0, %v813
      %v815 = vpop.f32.mrb[0].mxu0
      %816 = vmatprep.mubr.bf16.mxu0 0
      %817 = vmatmul.mubr.bf16.gmra.mrb[0].mxu0 %v634
      %v818 = vpop.f32.mrb[0].mxu0
      %v819 = vadd.f32 0.0, %v818
      %v820 = vpop.f32.mrb[0].mxu0
      %v821 = vpop.f32.mrb[0].mxu0
      %v822 = vadd.f32 0.0, %v821
      %v823 = vpop.f32.mrb[0].mxu0
      %824 = vmatprep.mubr.bf16.mxu0 0
      %825 = vmatmul.mubr.bf16.gmra.mrb[0].mxu0 %v637
      %v826 = vpop.f32.mrb[0].mxu0
      %v827 = vadd.f32 0.0, %v826
      %v828 = vpop.f32.mrb[0].mxu0
      %v829 = vpop.f32.mrb[0].mxu0
      %v830 = vadd.f32 0.0, %v829
      %v831 = vpop.f32.mrb[0].mxu0
      %832 = vmatprep.mubr.bf16.mxu0 0
      %833 = vmatmul.mubr.bf16.gmra.mrb[0].mxu0 %v640
      %v834 = vpop.f32.mrb[0].mxu0
      %v835 = vadd.f32 0.0, %v834
      %v836 = vpop.f32.mrb[0].mxu0
      %v837 = vpop.f32.mrb[0].mxu0
      %v838 = vadd.f32 0.0, %v837
      %v839 = vpop.f32.mrb[0].mxu0
      %840 = vmatprep.mubr.bf16.mxu0 0
      %841 = vmatmul.mubr.bf16.gmra.mrb[0].mxu0 %v643
      %v842 = vpop.f32.mrb[0].mxu0
      %v843 = vadd.f32 0.0, %v842
      %v844 = vpop.f32.mrb[0].mxu0
      %v845 = vpop.f32.mrb[0].mxu0
      %v846 = vadd.f32 0.0, %v845
      %v847 = vpop.f32.mrb[0].mxu0
      %848 = vmatprep.mubr.bf16.mxu0 0
      %849 = vmatmul.mubr.bf16.gmra.mrb[0].mxu0 %v646
      %v850 = vpop.f32.mrb[0].mxu0
      %v851 = vadd.f32 0.0, %v850
      %v852 = vpop.f32.mrb[0].mxu0
      %v853 = vpop.f32.mrb[0].mxu0
      %v854 = vadd.f32 0.0, %v853
      %v855 = vpop.f32.mrb[0].mxu0
      %856 = vmatprep.mubr.bf16.mxu0 0
      %857 = vmatmul.mubr.bf16.gmra.mrb[0].mxu0 %v649
      %v858 = vpop.f32.mrb[0].mxu0
      %v859 = vadd.f32 0.0, %v858
      %v860 = vpop.f32.mrb[0].mxu0
      %v861 = vpop.f32.mrb[0].mxu0
      %v862 = vadd.f32 0.0, %v861
      %v863 = vpop.f32.mrb[0].mxu0
      %864 = vmatprep.mubr.bf16.mxu0 0
      %865 = vmatmul.mubr.bf16.gmra.mrb[0].mxu0 %v652
      %v866 = vpop.f32.mrb[0].mxu0
      %v867 = vadd.f32 0.0, %v866
      %v868 = vpop.f32.mrb[0].mxu0
      %v869 = vpop.f32.mrb[0].mxu0
      %v870 = vadd.f32 0.0, %v869
      %v871 = vpop.f32.mrb[0].mxu0
      %872 = vmatprep.mubr.bf16.mxu0 0
      %873 = vmatmul.mubr.bf16.gmra.mrb[0].mxu0 %v655
      %v874 = vpop.f32.mrb[0].mxu0
      %v875 = vadd.f32 0.0, %v874
      %v876 = vpop.f32.mrb[0].mxu0
      %v877 = vpop.f32.mrb[0].mxu0
      %v878 = vadd.f32 0.0, %v877
      %v879 = vpop.f32.mrb[0].mxu0
      %880 = vmatprep.mubr.bf16.mxu0 0
      %881 = vmatmul.mubr.bf16.gmra.mrb[0].mxu0 %v658
      %v882 = vpop.f32.mrb[0].mxu0
      %v883 = vadd.f32 0.0, %v882
      %v884 = vpop.f32.mrb[0].mxu0
      %v885 = vpop.f32.mrb[0].mxu0
      %v886 = vadd.f32 0.0, %v885
      %v887 = vpop.f32.mrb[0].mxu0
      %888 = vmatprep.mubr.bf16.mxu0 0
      %889 = vmatmul.mubr.bf16.gmra.mrb[0].mxu0 %v661
      %v890 = vpop.f32.mrb[0].mxu0
      %v891 = vadd.f32 0.0, %v890
      %v892 = vpop.f32.mrb[0].mxu0
      %v893 = vpop.f32.mrb[0].mxu0
      %v894 = vadd.f32 0.0, %v893
      %v895 = vpop.f32.mrb[0].mxu0
      %896 = vmatprep.mubr.bf16.mxu0 0
      %897 = vmatmul.mubr.bf16.gmra.mrb[0].mxu0 %v664
      %v898 = vpop.f32.mrb[0].mxu0
      %v899 = vadd.f32 0.0, %v898
      %v900 = vpop.f32.mrb[0].mxu0
      %v901 = vpop.f32.mrb[0].mxu0
      %v902 = vadd.f32 0.0, %v901
      %v903 = vpop.f32.mrb[0].mxu0
      %904 = vmatprep.mubr.bf16.mxu0 0
      %905 = vmatmul.mubr.bf16.gmra.mrb[0].mxu0 %v667
      %v906 = vpop.f32.mrb[0].mxu0
      %v907 = vadd.f32 0.0, %v906
      %v908 = vpop.f32.mrb[0].mxu0
      %v909 = vpop.f32.mrb[0].mxu0
      %v910 = vadd.f32 0.0, %v909
      %v911 = vpop.f32.mrb[0].mxu0
      %912 = vmatprep.mubr.bf16.mxu0 0
      %913 = vmatmul.mubr.bf16.gmra.mrb[0].mxu0 %v670
      %v914 = vpop.f32.mrb[0].mxu0
      %v915 = vadd.f32 0.0, %v914
      %v916 = vpop.f32.mrb[0].mxu0
      %v917 = vpop.f32.mrb[0].mxu0
      %v918 = vadd.f32 0.0, %v917
      %v919 = vpop.f32.mrb[0].mxu0
      %920 = vmatprep.mubr.bf16.mxu0 0
      %921 = vmatmul.mubr.bf16.gmra.mrb[0].mxu0 %v673
      %v922 = vpop.f32.mrb[0].mxu0
      %v923 = vadd.f32 0.0, %v922
      %v924 = vpop.f32.mrb[0].mxu0
      %v925 = vpop.f32.mrb[0].mxu0
      %v926 = vadd.f32 0.0, %v925
      %v927 = vpop.f32.mrb[0].mxu0
      %928 = vmatprep.mubr.bf16.mxu0 0
      %929 = vmatmul.mubr.bf16.gmra.mrb[0].mxu0 %v676
      %v930 = vpop.f32.mrb[0].mxu0
      %v931 = vadd.f32 0.0, %v930
      %v932 = vpop.f32.mrb[0].mxu0
      %v933 = vpop.f32.mrb[0].mxu0
      %v934 = vadd.f32 0.0, %v933
      %v935 = vpop.f32.mrb[0].mxu0
      %936 = vmatprep.mubr.bf16.mxu0 0
      %937 = vmatmul.mubr.bf16.gmra.mrb[0].mxu0 %v679
      %v938 = vpop.f32.mrb[0].mxu0
      %v939 = vadd.f32 0.0, %v938
      %v940 = vpop.f32.mrb[0].mxu0
      %v941 = vpop.f32.mrb[0].mxu0
      %v942 = vadd.f32 0.0, %v941
      %v943 = vpop.f32.mrb[0].mxu0
      %944 = vmatprep.mubr.bf16.mxu0 0
      %945 = vmatmul.mubr.bf16.gmra.mrb[0].mxu0 %v682
      %v946 = vpop.f32.mrb[0].mxu0
      %v947 = vadd.f32 0.0, %v946
      %v948 = vpop.f32.mrb[0].mxu0
      %v949 = vpop.f32.mrb[0].mxu0
      %v950 = vadd.f32 0.0, %v949
      %v951 = vpop.f32.mrb[0].mxu0
      %952 = vmatprep.mubr.bf16.mxu0 0
      %953 = vmatmul.mubr.bf16.gmra.mrb[0].mxu0 %v685
      %v954 = vpop.f32.mrb[0].mxu0
      %v955 = vadd.f32 0.0, %v954
      %v956 = vpop.f32.mrb[0].mxu0
      %v957 = vpop.f32.mrb[0].mxu0
      %v958 = vadd.f32 0.0, %v957
      %v959 = vpop.f32.mrb[0].mxu0
      %960 = vmatprep.mubr.bf16.mxu0 0
      %961 = vmatmul.mubr.bf16.gmra.mrb[0].mxu0 %v688
      %v962 = vpop.f32.mrb[0].mxu0
      %v963 = vadd.f32 0.0, %v962
      %v964 = vpop.f32.mrb[0].mxu0
      %v965 = vpop.f32.mrb[0].mxu0
      %v966 = vadd.f32 0.0, %v965
      %v967 = vpop.f32.mrb[0].mxu0
      %968 = vmatprep.mubr.bf16.mxu0 0
      %969 = vmatmul.mubr.bf16.gmra.mrb[0].mxu0 %v691
      %v970 = vpop.f32.mrb[0].mxu0
      %v971 = vadd.f32 0.0, %v970
      %v972 = vpop.f32.mrb[0].mxu0
      %v973 = vpop.f32.mrb[0].mxu0
      %v974 = vadd.f32 0.0, %v973
      %v975 = vpop.f32.mrb[0].mxu0
      %976 = vmatprep.mubr.bf16.mxu0 0
      %977 = vmatmul.mubr.bf16.gmra.mrb[0].mxu0 %v694
      %v978 = vpop.f32.mrb[0].mxu0
      %v979 = vadd.f32 0.0, %v978
      %v980 = vpop.f32.mrb[0].mxu0
      %v981 = vpop.f32.mrb[0].mxu0
      %v982 = vadd.f32 0.0, %v981
      %v983 = vpop.f32.mrb[0].mxu0
      %984 = vdwg.mxu0
      %vm985 = vcmask 64512
      %v986 = vsel %vm985, %v731, 0.0
      %v987 = vsel %vm985, %v734, 0.0
      %v988 = vadd.f32 %v986, %v987
      %v989 = vsel %vm985, %v739, 0.0
      %v990 = vadd.f32 %v988, %v989
      %v991 = vsel %vm985, %v742, 0.0
      %v992 = vadd.f32 %v990, %v991
      %v993 = vsel %vm985, %v747, 0.0
      %v994 = vadd.f32 %v992, %v993
      %v995 = vsel %vm985, %v750, 0.0
      %v996 = vadd.f32 %v994, %v995
      %v997 = vsel %vm985, %v755, 0.0
      %v998 = vadd.f32 %v996, %v997
      %v999 = vsel %vm985, %v758, 0.0
      %v1000 = vadd.f32 %v998, %v999
      %v1001 = vsel %vm985, %v763, 0.0
      %v1002 = vadd.f32 %v1000, %v1001
      %v1003 = vsel %vm985, %v766, 0.0
      %v1004 = vadd.f32 %v1002, %v1003
      %v1005 = vsel %vm985, %v771, 0.0
      %v1006 = vadd.f32 %v1004, %v1005
      %v1007 = vsel %vm985, %v774, 0.0
      %v1008 = vadd.f32 %v1006, %v1007
      %v1009 = vsel %vm985, %v779, 0.0
      %v1010 = vadd.f32 %v1008, %v1009
      %v1011 = vsel %vm985, %v782, 0.0
      %v1012 = vadd.f32 %v1010, %v1011
      %v1013 = vsel %vm985, %v787, 0.0
      %v1014 = vadd.f32 %v1012, %v1013
      %v1015 = vsel %vm985, %v790, 0.0
      %v1016 = vadd.f32 %v1014, %v1015
      %v1017 = vsel %vm985, %v795, 0.0
      %v1018 = vadd.f32 %v1016, %v1017
      %v1019 = vsel %vm985, %v798, 0.0
      %v1020 = vadd.f32 %v1018, %v1019
      %v1021 = vsel %vm985, %v803, 0.0
      %v1022 = vadd.f32 %v1020, %v1021
      %v1023 = vsel %vm985, %v806, 0.0
      %v1024 = vadd.f32 %v1022, %v1023
      %v1025 = vsel %vm985, %v811, 0.0
      %v1026 = vadd.f32 %v1024, %v1025
      %v1027 = vsel %vm985, %v814, 0.0
      %v1028 = vadd.f32 %v1026, %v1027
      %v1029 = vsel %vm985, %v819, 0.0
      %v1030 = vadd.f32 %v1028, %v1029
      %v1031 = vsel %vm985, %v822, 0.0
      %v1032 = vadd.f32 %v1030, %v1031
      %v1033 = vsel %vm985, %v827, 0.0
      %v1034 = vadd.f32 %v1032, %v1033
      %v1035 = vsel %vm985, %v830, 0.0
      %v1036 = vadd.f32 %v1034, %v1035
      %v1037 = vsel %vm985, %v835, 0.0
      %v1038 = vadd.f32 %v1036, %v1037
      %v1039 = vsel %vm985, %v838, 0.0
      %v1040 = vadd.f32 %v1038, %v1039
      %v1041 = vsel %vm985, %v843, 0.0
      %v1042 = vadd.f32 %v1040, %v1041
      %v1043 = vsel %vm985, %v846, 0.0
      %v1044 = vadd.f32 %v1042, %v1043
      %v1045 = vsel %vm985, %v851, 0.0
      %v1046 = vadd.f32 %v1044, %v1045
      %v1047 = vsel %vm985, %v854, 0.0
      %v1048 = vadd.f32 %v1046, %v1047
      %v1049 = vsel %vm985, %v859, 0.0
      %v1050 = vadd.f32 %v1048, %v1049
      %v1051 = vsel %vm985, %v862, 0.0
      %v1052 = vadd.f32 %v1050, %v1051
      %v1053 = vsel %vm985, %v867, 0.0
      %v1054 = vadd.f32 %v1052, %v1053
      %v1055 = vsel %vm985, %v870, 0.0
      %v1056 = vadd.f32 %v1054, %v1055
      %v1057 = vsel %vm985, %v875, 0.0
      %v1058 = vadd.f32 %v1056, %v1057
      %v1059 = vsel %vm985, %v878, 0.0
      %v1060 = vadd.f32 %v1058, %v1059
      %v1061 = vsel %vm985, %v883, 0.0
      %v1062 = vadd.f32 %v1060, %v1061
      %v1063 = vsel %vm985, %v886, 0.0
      %v1064 = vadd.f32 %v1062, %v1063
      %v1065 = vsel %vm985, %v891, 0.0
      %v1066 = vadd.f32 %v1064, %v1065
      %v1067 = vsel %vm985, %v894, 0.0
      %v1068 = vadd.f32 %v1066, %v1067
      %v1069 = vsel %vm985, %v899, 0.0
      %v1070 = vadd.f32 %v1068, %v1069
      %v1071 = vsel %vm985, %v902, 0.0
      %v1072 = vadd.f32 %v1070, %v1071
      %v1073 = vsel %vm985, %v907, 0.0
      %v1074 = vadd.f32 %v1072, %v1073
      %v1075 = vsel %vm985, %v910, 0.0
      %v1076 = vadd.f32 %v1074, %v1075
      %v1077 = vsel %vm985, %v915, 0.0
      %v1078 = vadd.f32 %v1076, %v1077
      %v1079 = vsel %vm985, %v918, 0.0
      %v1080 = vadd.f32 %v1078, %v1079
      %v1081 = vsel %vm985, %v923, 0.0
      %v1082 = vadd.f32 %v1080, %v1081
      %v1083 = vsel %vm985, %v926, 0.0
      %v1084 = vadd.f32 %v1082, %v1083
      %v1085 = vsel %vm985, %v931, 0.0
      %v1086 = vadd.f32 %v1084, %v1085
      %v1087 = vsel %vm985, %v934, 0.0
      %v1088 = vadd.f32 %v1086, %v1087
      %v1089 = vsel %vm985, %v939, 0.0
      %v1090 = vadd.f32 %v1088, %v1089
      %v1091 = vsel %vm985, %v942, 0.0
      %v1092 = vadd.f32 %v1090, %v1091
      %v1093 = vsel %vm985, %v947, 0.0
      %v1094 = vadd.f32 %v1092, %v1093
      %v1095 = vsel %vm985, %v950, 0.0
      %v1096 = vadd.f32 %v1094, %v1095
      %v1097 = vsel %vm985, %v955, 0.0
      %v1098 = vadd.f32 %v1096, %v1097
      %v1099 = vsel %vm985, %v958, 0.0
      %v1100 = vadd.f32 %v1098, %v1099
      %v1101 = vsel %vm985, %v963, 0.0
      %v1102 = vadd.f32 %v1100, %v1101
      %v1103 = vsel %vm985, %v966, 0.0
      %v1104 = vadd.f32 %v1102, %v1103
      %v1105 = vsel %vm985, %v971, 0.0
      %v1106 = vadd.f32 %v1104, %v1105
      %v1107 = vsel %vm985, %v974, 0.0
      %v1108 = vadd.f32 %v1106, %v1107
      %v1109 = vsel %vm985, %v979, 0.0
      %v1110 = vadd.f32 %v1108, %v1109
      %v1111 = vsel %vm985, %v982, 0.0
      %v1112 = vadd.f32 %v1110, %v1111
      %v1113 = vrot.slane %v1112, 4
      %v1114 = vadd.f32 %v1112, %v1113
      %v1115 = vrot.slane %v1114, 2
      %v1116 = vadd.f32 %v1114, %v1115
      %v1117 = vrot.slane %v1116, 1
      %v1118 = vadd.f32 %v1116, %v1117
      %v1119 = vmul.f32 %v731, %v731
      %v1120 = vmul.f32 %v734, %v734
      %v1121 = vmul.f32 %v739, %v739
      %v1122 = vmul.f32 %v742, %v742
      %v1123 = vmul.f32 %v747, %v747
      %v1124 = vmul.f32 %v750, %v750
      %v1125 = vmul.f32 %v755, %v755
      %v1126 = vmul.f32 %v758, %v758
      %v1127 = vmul.f32 %v763, %v763
      %v1128 = vmul.f32 %v766, %v766
      %v1129 = vmul.f32 %v771, %v771
      %v1130 = vmul.f32 %v774, %v774
      %v1131 = vmul.f32 %v779, %v779
      %v1132 = vmul.f32 %v782, %v782
      %v1133 = vmul.f32 %v787, %v787
      %v1134 = vmul.f32 %v790, %v790
      %v1135 = vmul.f32 %v795, %v795
      %v1136 = vmul.f32 %v798, %v798
      %v1137 = vmul.f32 %v803, %v803
      %v1138 = vmul.f32 %v806, %v806
      %v1139 = vmul.f32 %v811, %v811
      %v1140 = vmul.f32 %v814, %v814
      %v1141 = vmul.f32 %v819, %v819
      %v1142 = vmul.f32 %v822, %v822
      %v1143 = vmul.f32 %v827, %v827
      %v1144 = vmul.f32 %v830, %v830
      %v1145 = vmul.f32 %v835, %v835
      %v1146 = vmul.f32 %v838, %v838
      %v1147 = vmul.f32 %v843, %v843
      %v1148 = vmul.f32 %v846, %v846
      %v1149 = vmul.f32 %v851, %v851
      %v1150 = vmul.f32 %v854, %v854
      %v1151 = vmul.f32 %v859, %v859
      %v1152 = vmul.f32 %v862, %v862
      %v1153 = vmul.f32 %v867, %v867
      %v1154 = vmul.f32 %v870, %v870
      %v1155 = vmul.f32 %v875, %v875
      %v1156 = vmul.f32 %v878, %v878
      %v1157 = vmul.f32 %v883, %v883
      %v1158 = vmul.f32 %v886, %v886
      %v1159 = vmul.f32 %v891, %v891
      %v1160 = vmul.f32 %v894, %v894
      %v1161 = vmul.f32 %v899, %v899
      %v1162 = vmul.f32 %v902, %v902
      %v1163 = vmul.f32 %v907, %v907
      %v1164 = vmul.f32 %v910, %v910
      %v1165 = vmul.f32 %v915, %v915
      %v1166 = vmul.f32 %v918, %v918
      %v1167 = vmul.f32 %v923, %v923
      %v1168 = vmul.f32 %v926, %v926
      %v1169 = vmul.f32 %v931, %v931
      %v1170 = vmul.f32 %v934, %v934
      %v1171 = vmul.f32 %v939, %v939
      %v1172 = vmul.f32 %v942, %v942
      %v1173 = vmul.f32 %v947, %v947
      %v1174 = vmul.f32 %v950, %v950
      %v1175 = vmul.f32 %v955, %v955
      %v1176 = vmul.f32 %v958, %v958
      %v1177 = vmul.f32 %v963, %v963
      %v1178 = vmul.f32 %v966, %v966
      %v1179 = vmul.f32 %v971, %v971
      %v1180 = vmul.f32 %v974, %v974
      %v1181 = vmul.f32 %v979, %v979
      %v1182 = vmul.f32 %v982, %v982
      %v1183 = vsel %vm985, %v1119, 0.0
      %v1184 = vsel %vm985, %v1120, 0.0
      %v1185 = vadd.f32 %v1183, %v1184
      %v1186 = vsel %vm985, %v1121, 0.0
      %v1187 = vadd.f32 %v1185, %v1186
      %v1188 = vsel %vm985, %v1122, 0.0
      %v1189 = vadd.f32 %v1187, %v1188
      %v1190 = vsel %vm985, %v1123, 0.0
      %v1191 = vadd.f32 %v1189, %v1190
      %v1192 = vsel %vm985, %v1124, 0.0
      %v1193 = vadd.f32 %v1191, %v1192
      %v1194 = vsel %vm985, %v1125, 0.0
      %v1195 = vadd.f32 %v1193, %v1194
      %v1196 = vsel %vm985, %v1126, 0.0
      %v1197 = vadd.f32 %v1195, %v1196
      %v1198 = vsel %vm985, %v1127, 0.0
      %v1199 = vadd.f32 %v1197, %v1198
      %v1200 = vsel %vm985, %v1128, 0.0
      %v1201 = vadd.f32 %v1199, %v1200
      %v1202 = vsel %vm985, %v1129, 0.0
      %v1203 = vadd.f32 %v1201, %v1202
      %v1204 = vsel %vm985, %v1130, 0.0
      %v1205 = vadd.f32 %v1203, %v1204
      %v1206 = vsel %vm985, %v1131, 0.0
      %v1207 = vadd.f32 %v1205, %v1206
      %v1208 = vsel %vm985, %v1132, 0.0
      %v1209 = vadd.f32 %v1207, %v1208
      %v1210 = vsel %vm985, %v1133, 0.0
      %v1211 = vadd.f32 %v1209, %v1210
      %v1212 = vsel %vm985, %v1134, 0.0
      %v1213 = vadd.f32 %v1211, %v1212
      %v1214 = vsel %vm985, %v1135, 0.0
      %v1215 = vadd.f32 %v1213, %v1214
      %v1216 = vsel %vm985, %v1136, 0.0
      %v1217 = vadd.f32 %v1215, %v1216
      %v1218 = vsel %vm985, %v1137, 0.0
      %v1219 = vadd.f32 %v1217, %v1218
      %v1220 = vsel %vm985, %v1138, 0.0
      %v1221 = vadd.f32 %v1219, %v1220
      %v1222 = vsel %vm985, %v1139, 0.0
      %v1223 = vadd.f32 %v1221, %v1222
      %v1224 = vsel %vm985, %v1140, 0.0
      %v1225 = vadd.f32 %v1223, %v1224
      %v1226 = vsel %vm985, %v1141, 0.0
      %v1227 = vadd.f32 %v1225, %v1226
      %v1228 = vsel %vm985, %v1142, 0.0
      %v1229 = vadd.f32 %v1227, %v1228
      %v1230 = vsel %vm985, %v1143, 0.0
      %v1231 = vadd.f32 %v1229, %v1230
      %v1232 = vsel %vm985, %v1144, 0.0
      %v1233 = vadd.f32 %v1231, %v1232
      %v1234 = vsel %vm985, %v1145, 0.0
      %v1235 = vadd.f32 %v1233, %v1234
      %v1236 = vsel %vm985, %v1146, 0.0
      %v1237 = vadd.f32 %v1235, %v1236
      %v1238 = vsel %vm985, %v1147, 0.0
      %v1239 = vadd.f32 %v1237, %v1238
      %v1240 = vsel %vm985, %v1148, 0.0
      %v1241 = vadd.f32 %v1239, %v1240
      %v1242 = vsel %vm985, %v1149, 0.0
      %v1243 = vadd.f32 %v1241, %v1242
      %v1244 = vsel %vm985, %v1150, 0.0
      %v1245 = vadd.f32 %v1243, %v1244
      %v1246 = vsel %vm985, %v1151, 0.0
      %v1247 = vadd.f32 %v1245, %v1246
      %v1248 = vsel %vm985, %v1152, 0.0
      %v1249 = vadd.f32 %v1247, %v1248
      %v1250 = vsel %vm985, %v1153, 0.0
      %v1251 = vadd.f32 %v1249, %v1250
      %v1252 = vsel %vm985, %v1154, 0.0
      %v1253 = vadd.f32 %v1251, %v1252
      %v1254 = vsel %vm985, %v1155, 0.0
      %v1255 = vadd.f32 %v1253, %v1254
      %v1256 = vsel %vm985, %v1156, 0.0
      %v1257 = vadd.f32 %v1255, %v1256
      %v1258 = vsel %vm985, %v1157, 0.0
      %v1259 = vadd.f32 %v1257, %v1258
      %v1260 = vsel %vm985, %v1158, 0.0
      %v1261 = vadd.f32 %v1259, %v1260
      %v1262 = vsel %vm985, %v1159, 0.0
      %v1263 = vadd.f32 %v1261, %v1262
      %v1264 = vsel %vm985, %v1160, 0.0
      %v1265 = vadd.f32 %v1263, %v1264
      %v1266 = vsel %vm985, %v1161, 0.0
      %v1267 = vadd.f32 %v1265, %v1266
      %v1268 = vsel %vm985, %v1162, 0.0
      %v1269 = vadd.f32 %v1267, %v1268
      %v1270 = vsel %vm985, %v1163, 0.0
      %v1271 = vadd.f32 %v1269, %v1270
      %v1272 = vsel %vm985, %v1164, 0.0
      %v1273 = vadd.f32 %v1271, %v1272
      %v1274 = vsel %vm985, %v1165, 0.0
      %v1275 = vadd.f32 %v1273, %v1274
      %v1276 = vsel %vm985, %v1166, 0.0
      %v1277 = vadd.f32 %v1275, %v1276
      %v1278 = vsel %vm985, %v1167, 0.0
      %v1279 = vadd.f32 %v1277, %v1278
      %v1280 = vsel %vm985, %v1168, 0.0
      %v1281 = vadd.f32 %v1279, %v1280
      %v1282 = vsel %vm985, %v1169, 0.0
      %v1283 = vadd.f32 %v1281, %v1282
      %v1284 = vsel %vm985, %v1170, 0.0
      %v1285 = vadd.f32 %v1283, %v1284
      %v1286 = vsel %vm985, %v1171, 0.0
      %v1287 = vadd.f32 %v1285, %v1286
      %v1288 = vsel %vm985, %v1172, 0.0
      %v1289 = vadd.f32 %v1287, %v1288
      %v1290 = vsel %vm985, %v1173, 0.0
      %v1291 = vadd.f32 %v1289, %v1290
      %v1292 = vsel %vm985, %v1174, 0.0
      %v1293 = vadd.f32 %v1291, %v1292
      %v1294 = vsel %vm985, %v1175, 0.0
      %v1295 = vadd.f32 %v1293, %v1294
      %v1296 = vsel %vm985, %v1176, 0.0
      %v1297 = vadd.f32 %v1295, %v1296
      %v1298 = vsel %vm985, %v1177, 0.0
      %v1299 = vadd.f32 %v1297, %v1298
      %v1300 = vsel %vm985, %v1178, 0.0
      %v1301 = vadd.f32 %v1299, %v1300
      %v1302 = vsel %vm985, %v1179, 0.0
      %v1303 = vadd.f32 %v1301, %v1302
      %v1304 = vsel %vm985, %v1180, 0.0
      %v1305 = vadd.f32 %v1303, %v1304
      %v1306 = vsel %vm985, %v1181, 0.0
      %v1307 = vadd.f32 %v1305, %v1306
      %v1308 = vsel %vm985, %v1182, 0.0
      %v1309 = vadd.f32 %v1307, %v1308
      %v1310 = vrot.slane %v1309, 4
      %v1311 = vadd.f32 %v1309, %v1310
      %v1312 = vrot.slane %v1311, 2
      %v1313 = vadd.f32 %v1311, %v1312
      %v1314 = vrot.slane %v1313, 1
      %v1315 = vadd.f32 %v1313, %v1314
      %1316 = vst.msk [vmem:[%s342] sm:$0xff] %vm985, %v1118
      %1317 = vst.msk [vmem:[%s349] sm:$0xff] %vm985, %v1315
      %v1318 = vld [vmem:[%s326] sm:$0x1]
      %v1320 = vlaneseq
      %v1321 = vshrl.u32 %v1320, 7
      %v1322 = vsub.s32 0, %v1321
      %v1323 = vrot.slane %v1318, %v1322
      %v1325 = vadd.f32 %v731, %v1323
      %v1326 = vadd.f32 %v734, %v1323
      %v1327 = vadd.f32 %v739, %v1323
      %v1328 = vadd.f32 %v742, %v1323
      %v1329 = vadd.f32 %v747, %v1323
      %v1330 = vadd.f32 %v750, %v1323
      %v1331 = vadd.f32 %v755, %v1323
      %v1332 = vadd.f32 %v758, %v1323
      %v1333 = vadd.f32 %v763, %v1323
      %v1334 = vadd.f32 %v766, %v1323
      %v1335 = vadd.f32 %v771, %v1323
      %v1336 = vadd.f32 %v774, %v1323
      %v1337 = vadd.f32 %v779, %v1323
      %v1338 = vadd.f32 %v782, %v1323
      %v1339 = vadd.f32 %v787, %v1323
      %v1340 = vadd.f32 %v790, %v1323
      %v1341 = vadd.f32 %v795, %v1323
      %v1342 = vadd.f32 %v798, %v1323
      %v1343 = vadd.f32 %v803, %v1323
      %v1344 = vadd.f32 %v806, %v1323
      %v1345 = vadd.f32 %v811, %v1323
      %v1346 = vadd.f32 %v814, %v1323
      %v1347 = vadd.f32 %v819, %v1323
      %v1348 = vadd.f32 %v822, %v1323
      %v1349 = vadd.f32 %v827, %v1323
      %v1350 = vadd.f32 %v830, %v1323
      %v1351 = vadd.f32 %v835, %v1323
      %v1352 = vadd.f32 %v838, %v1323
      %v1353 = vadd.f32 %v843, %v1323
      %v1354 = vadd.f32 %v846, %v1323
      %v1355 = vadd.f32 %v851, %v1323
      %v1356 = vadd.f32 %v854, %v1323
      %v1357 = vadd.f32 %v859, %v1323
      %v1358 = vadd.f32 %v862, %v1323
      %v1359 = vadd.f32 %v867, %v1323
      %v1360 = vadd.f32 %v870, %v1323
      %v1361 = vadd.f32 %v875, %v1323
      %v1362 = vadd.f32 %v878, %v1323
      %v1363 = vadd.f32 %v883, %v1323
      %v1364 = vadd.f32 %v886, %v1323
      %v1365 = vadd.f32 %v891, %v1323
      %v1366 = vadd.f32 %v894, %v1323
      %v1367 = vadd.f32 %v899, %v1323
      %v1368 = vadd.f32 %v902, %v1323
      %v1369 = vadd.f32 %v907, %v1323
      %v1370 = vadd.f32 %v910, %v1323
      %v1371 = vadd.f32 %v915, %v1323
      %v1372 = vadd.f32 %v918, %v1323
      %v1373 = vadd.f32 %v923, %v1323
      %v1374 = vadd.f32 %v926, %v1323
      %v1375 = vadd.f32 %v931, %v1323
      %v1376 = vadd.f32 %v934, %v1323
      %v1377 = vadd.f32 %v939, %v1323
      %v1378 = vadd.f32 %v942, %v1323
      %v1379 = vadd.f32 %v947, %v1323
      %v1380 = vadd.f32 %v950, %v1323
      %v1381 = vadd.f32 %v955, %v1323
      %v1382 = vadd.f32 %v958, %v1323
      %v1383 = vadd.f32 %v963, %v1323
      %v1384 = vadd.f32 %v966, %v1323
      %v1385 = vadd.f32 %v971, %v1323
      %v1386 = vadd.f32 %v974, %v1323
      %v1387 = vadd.f32 %v979, %v1323
      %v1388 = vadd.f32 %v982, %v1323
      %vm1389 = vcmp.ge.f32.partialorder %v1325, 0.0
      %vm1390 = vcmp.ge.f32.partialorder %v1326, 0.0
      %vm1391 = vcmp.ge.f32.partialorder %v1327, 0.0
      %vm1392 = vcmp.ge.f32.partialorder %v1328, 0.0
      %vm1393 = vcmp.ge.f32.partialorder %v1329, 0.0
      %vm1394 = vcmp.ge.f32.partialorder %v1330, 0.0
      %vm1395 = vcmp.ge.f32.partialorder %v1331, 0.0
      %vm1396 = vcmp.ge.f32.partialorder %v1332, 0.0
      %vm1397 = vcmp.ge.f32.partialorder %v1333, 0.0
      %vm1398 = vcmp.ge.f32.partialorder %v1334, 0.0
      %vm1399 = vcmp.ge.f32.partialorder %v1335, 0.0
      %vm1400 = vcmp.ge.f32.partialorder %v1336, 0.0
      %vm1401 = vcmp.ge.f32.partialorder %v1337, 0.0
      %vm1402 = vcmp.ge.f32.partialorder %v1338, 0.0
      %vm1403 = vcmp.ge.f32.partialorder %v1339, 0.0
      %vm1404 = vcmp.ge.f32.partialorder %v1340, 0.0
      %vm1405 = vcmp.ge.f32.partialorder %v1341, 0.0
      %vm1406 = vcmp.ge.f32.partialorder %v1342, 0.0
      %vm1407 = vcmp.ge.f32.partialorder %v1343, 0.0
      %vm1408 = vcmp.ge.f32.partialorder %v1344, 0.0
      %vm1409 = vcmp.ge.f32.partialorder %v1345, 0.0
      %vm1410 = vcmp.ge.f32.partialorder %v1346, 0.0
      %vm1411 = vcmp.ge.f32.partialorder %v1347, 0.0
      %vm1412 = vcmp.ge.f32.partialorder %v1348, 0.0
      %vm1413 = vcmp.ge.f32.partialorder %v1349, 0.0
      %vm1414 = vcmp.ge.f32.partialorder %v1350, 0.0
      %vm1415 = vcmp.ge.f32.partialorder %v1351, 0.0
      %vm1416 = vcmp.ge.f32.partialorder %v1352, 0.0
      %vm1417 = vcmp.ge.f32.partialorder %v1353, 0.0
      %vm1418 = vcmp.ge.f32.partialorder %v1354, 0.0
      %vm1419 = vcmp.ge.f32.partialorder %v1355, 0.0
      %vm1420 = vcmp.ge.f32.partialorder %v1356, 0.0
      %vm1421 = vcmp.ge.f32.partialorder %v1357, 0.0
      %vm1422 = vcmp.ge.f32.partialorder %v1358, 0.0
      %vm1423 = vcmp.ge.f32.partialorder %v1359, 0.0
      %vm1424 = vcmp.ge.f32.partialorder %v1360, 0.0
      %vm1425 = vcmp.ge.f32.partialorder %v1361, 0.0
      %vm1426 = vcmp.ge.f32.partialorder %v1362, 0.0
      %vm1427 = vcmp.ge.f32.partialorder %v1363, 0.0
      %vm1428 = vcmp.ge.f32.partialorder %v1364, 0.0
      %vm1429 = vcmp.ge.f32.partialorder %v1365, 0.0
      %vm1430 = vcmp.ge.f32.partialorder %v1366, 0.0
      %vm1431 = vcmp.ge.f32.partialorder %v1367, 0.0
      %vm1432 = vcmp.ge.f32.partialorder %v1368, 0.0
      %vm1433 = vcmp.ge.f32.partialorder %v1369, 0.0
      %vm1434 = vcmp.ge.f32.partialorder %v1370, 0.0
      %vm1435 = vcmp.ge.f32.partialorder %v1371, 0.0
      %vm1436 = vcmp.ge.f32.partialorder %v1372, 0.0
      %vm1437 = vcmp.ge.f32.partialorder %v1373, 0.0
      %vm1438 = vcmp.ge.f32.partialorder %v1374, 0.0
      %vm1439 = vcmp.ge.f32.partialorder %v1375, 0.0
      %vm1440 = vcmp.ge.f32.partialorder %v1376, 0.0
      %vm1441 = vcmp.ge.f32.partialorder %v1377, 0.0
      %vm1442 = vcmp.ge.f32.partialorder %v1378, 0.0
      %vm1443 = vcmp.ge.f32.partialorder %v1379, 0.0
      %vm1444 = vcmp.ge.f32.partialorder %v1380, 0.0
      %vm1445 = vcmp.ge.f32.partialorder %v1381, 0.0
      %vm1446 = vcmp.ge.f32.partialorder %v1382, 0.0
      %vm1447 = vcmp.ge.f32.partialorder %v1383, 0.0
      %vm1448 = vcmp.ge.f32.partialorder %v1384, 0.0
      %vm1449 = vcmp.ge.f32.partialorder %v1385, 0.0
      %vm1450 = vcmp.ge.f32.partialorder %v1386, 0.0
      %vm1451 = vcmp.ge.f32.partialorder %v1387, 0.0
      %vm1452 = vcmp.ge.f32.partialorder %v1388, 0.0
      %v1453 = vmul.f32 %v1325, 0.1
      %v1454 = vmul.f32 %v1326, 0.1
      %v1455 = vmul.f32 %v1327, 0.1
      %v1456 = vmul.f32 %v1328, 0.1
      %v1457 = vmul.f32 %v1329, 0.1
      %v1458 = vmul.f32 %v1330, 0.1
      %v1459 = vmul.f32 %v1331, 0.1
      %v1460 = vmul.f32 %v1332, 0.1
      %v1461 = vmul.f32 %v1333, 0.1
      %v1462 = vmul.f32 %v1334, 0.1
      %v1463 = vmul.f32 %v1335, 0.1
      %v1464 = vmul.f32 %v1336, 0.1
      %v1465 = vmul.f32 %v1337, 0.1
      %v1466 = vmul.f32 %v1338, 0.1
      %v1467 = vmul.f32 %v1339, 0.1
      %v1468 = vmul.f32 %v1340, 0.1
      %v1469 = vmul.f32 %v1341, 0.1
      %v1470 = vmul.f32 %v1342, 0.1
      %v1471 = vmul.f32 %v1343, 0.1
      %v1472 = vmul.f32 %v1344, 0.1
      %v1473 = vmul.f32 %v1345, 0.1
      %v1474 = vmul.f32 %v1346, 0.1
      %v1475 = vmul.f32 %v1347, 0.1
      %v1476 = vmul.f32 %v1348, 0.1
      %v1477 = vmul.f32 %v1349, 0.1
      %v1478 = vmul.f32 %v1350, 0.1
      %v1479 = vmul.f32 %v1351, 0.1
      %v1480 = vmul.f32 %v1352, 0.1
      %v1481 = vmul.f32 %v1353, 0.1
      %v1482 = vmul.f32 %v1354, 0.1
      %v1483 = vmul.f32 %v1355, 0.1
      %v1484 = vmul.f32 %v1356, 0.1
      %v1485 = vmul.f32 %v1357, 0.1
      %v1486 = vmul.f32 %v1358, 0.1
      %v1487 = vmul.f32 %v1359, 0.1
      %v1488 = vmul.f32 %v1360, 0.1
      %v1489 = vmul.f32 %v1361, 0.1
      %v1490 = vmul.f32 %v1362, 0.1
      %v1491 = vmul.f32 %v1363, 0.1
      %v1492 = vmul.f32 %v1364, 0.1
      %v1493 = vmul.f32 %v1365, 0.1
      %v1494 = vmul.f32 %v1366, 0.1
      %v1495 = vmul.f32 %v1367, 0.1
      %v1496 = vmul.f32 %v1368, 0.1
      %v1497 = vmul.f32 %v1369, 0.1
      %v1498 = vmul.f32 %v1370, 0.1
      %v1499 = vmul.f32 %v1371, 0.1
      %v1500 = vmul.f32 %v1372, 0.1
      %v1501 = vmul.f32 %v1373, 0.1
      %v1502 = vmul.f32 %v1374, 0.1
      %v1503 = vmul.f32 %v1375, 0.1
      %v1504 = vmul.f32 %v1376, 0.1
      %v1505 = vmul.f32 %v1377, 0.1
      %v1506 = vmul.f32 %v1378, 0.1
      %v1507 = vmul.f32 %v1379, 0.1
      %v1508 = vmul.f32 %v1380, 0.1
      %v1509 = vmul.f32 %v1381, 0.1
      %v1510 = vmul.f32 %v1382, 0.1
      %v1511 = vmul.f32 %v1383, 0.1
      %v1512 = vmul.f32 %v1384, 0.1
      %v1513 = vmul.f32 %v1385, 0.1
      %v1514 = vmul.f32 %v1386, 0.1
      %v1515 = vmul.f32 %v1387, 0.1
      %v1516 = vmul.f32 %v1388, 0.1
      %v1517 = vsel %vm1389, %v1325, %v1453
      %v1518 = vsel %vm1390, %v1326, %v1454
      %v1519 = vsel %vm1391, %v1327, %v1455
      %v1520 = vsel %vm1392, %v1328, %v1456
      %v1521 = vsel %vm1393, %v1329, %v1457
      %v1522 = vsel %vm1394, %v1330, %v1458
      %v1523 = vsel %vm1395, %v1331, %v1459
      %v1524 = vsel %vm1396, %v1332, %v1460
      %v1525 = vsel %vm1397, %v1333, %v1461
      %v1526 = vsel %vm1398, %v1334, %v1462
      %v1527 = vsel %vm1399, %v1335, %v1463
      %v1528 = vsel %vm1400, %v1336, %v1464
      %v1529 = vsel %vm1401, %v1337, %v1465
      %v1530 = vsel %vm1402, %v1338, %v1466
      %v1531 = vsel %vm1403, %v1339, %v1467
      %v1532 = vsel %vm1404, %v1340, %v1468
      %v1533 = vsel %vm1405, %v1341, %v1469
      %v1534 = vsel %vm1406, %v1342, %v1470
      %v1535 = vsel %vm1407, %v1343, %v1471
      %v1536 = vsel %vm1408, %v1344, %v1472
      %v1537 = vsel %vm1409, %v1345, %v1473
      %v1538 = vsel %vm1410, %v1346, %v1474
      %v1539 = vsel %vm1411, %v1347, %v1475
      %v1540 = vsel %vm1412, %v1348, %v1476
      %v1541 = vsel %vm1413, %v1349, %v1477
      %v1542 = vsel %vm1414, %v1350, %v1478
      %v1543 = vsel %vm1415, %v1351, %v1479
      %v1544 = vsel %vm1416, %v1352, %v1480
      %v1545 = vsel %vm1417, %v1353, %v1481
      %v1546 = vsel %vm1418, %v1354, %v1482
      %v1547 = vsel %vm1419, %v1355, %v1483
      %v1548 = vsel %vm1420, %v1356, %v1484
      %v1549 = vsel %vm1421, %v1357, %v1485
      %v1550 = vsel %vm1422, %v1358, %v1486
      %v1551 = vsel %vm1423, %v1359, %v1487
      %v1552 = vsel %vm1424, %v1360, %v1488
      %v1553 = vsel %vm1425, %v1361, %v1489
      %v1554 = vsel %vm1426, %v1362, %v1490
      %v1555 = vsel %vm1427, %v1363, %v1491
      %v1556 = vsel %vm1428, %v1364, %v1492
      %v1557 = vsel %vm1429, %v1365, %v1493
      %v1558 = vsel %vm1430, %v1366, %v1494
      %v1559 = vsel %vm1431, %v1367, %v1495
      %v1560 = vsel %vm1432, %v1368, %v1496
      %v1561 = vsel %vm1433, %v1369, %v1497
      %v1562 = vsel %vm1434, %v1370, %v1498
      %v1563 = vsel %vm1435, %v1371, %v1499
      %v1564 = vsel %vm1436, %v1372, %v1500
      %v1565 = vsel %vm1437, %v1373, %v1501
      %v1566 = vsel %vm1438, %v1374, %v1502
      %v1567 = vsel %vm1439, %v1375, %v1503
      %v1568 = vsel %vm1440, %v1376, %v1504
      %v1569 = vsel %vm1441, %v1377, %v1505
      %v1570 = vsel %vm1442, %v1378, %v1506
      %v1571 = vsel %vm1443, %v1379, %v1507
      %v1572 = vsel %vm1444, %v1380, %v1508
      %v1573 = vsel %vm1445, %v1381, %v1509
      %v1574 = vsel %vm1446, %v1382, %v1510
      %v1575 = vsel %vm1447, %v1383, %v1511
      %v1576 = vsel %vm1448, %v1384, %v1512
      %v1577 = vsel %vm1449, %v1385, %v1513
      %v1578 = vsel %vm1450, %v1386, %v1514
      %v1579 = vsel %vm1451, %v1387, %v1515
      %v1580 = vsel %vm1452, %v1388, %v1516
      %1581 = vst.msk [vmem:[%s334] sm:$0xff] %vm985, %v1517
      %1582 = vst.msk [vmem:[%s334 + $0x8] sm:$0xff] %vm985, %v1518
      %1583 = vst.msk [vmem:[%s334 + $0x10] sm:$0xff] %vm985, %v1519
      %1584 = vst.msk [vmem:[%s334 + $0x18] sm:$0xff] %vm985, %v1520
      %1585 = vst.msk [vmem:[%s334 + $0x20] sm:$0xff] %vm985, %v1521
      %1586 = vst.msk [vmem:[%s334 + $0x28] sm:$0xff] %vm985, %v1522
      %1587 = vst.msk [vmem:[%s334 + $0x30] sm:$0xff] %vm985, %v1523
      %1588 = vst.msk [vmem:[%s334 + $0x38] sm:$0xff] %vm985, %v1524
      %1589 = vst.msk [vmem:[%s334 + $0x40] sm:$0xff] %vm985, %v1525
      %1590 = vst.msk [vmem:[%s334 + $0x48] sm:$0xff] %vm985, %v1526
      %1591 = vst.msk [vmem:[%s334 + $0x50] sm:$0xff] %vm985, %v1527
      %1592 = vst.msk [vmem:[%s334 + $0x58] sm:$0xff] %vm985, %v1528
      %1593 = vst.msk [vmem:[%s334 + $0x60] sm:$0xff] %vm985, %v1529
      %1594 = vst.msk [vmem:[%s334 + $0x68] sm:$0xff] %vm985, %v1530
      %1595 = vst.msk [vmem:[%s334 + $0x70] sm:$0xff] %vm985, %v1531
      %1596 = vst.msk [vmem:[%s334 + $0x78] sm:$0xff] %vm985, %v1532
      %1597 = vst.msk [vmem:[%s334 + $0x80] sm:$0xff] %vm985, %v1533
      %1598 = vst.msk [vmem:[%s334 + $0x88] sm:$0xff] %vm985, %v1534
      %1599 = vst.msk [vmem:[%s334 + $0x90] sm:$0xff] %vm985, %v1535
      %1600 = vst.msk [vmem:[%s334 + $0x98] sm:$0xff] %vm985, %v1536
      %1601 = vst.msk [vmem:[%s334 + $0xa0] sm:$0xff] %vm985, %v1537
      %1602 = vst.msk [vmem:[%s334 + $0xa8] sm:$0xff] %vm985, %v1538
      %1603 = vst.msk [vmem:[%s334 + $0xb0] sm:$0xff] %vm985, %v1539
      %1604 = vst.msk [vmem:[%s334 + $0xb8] sm:$0xff] %vm985, %v1540
      %1605 = vst.msk [vmem:[%s334 + $0xc0] sm:$0xff] %vm985, %v1541
      %1606 = vst.msk [vmem:[%s334 + $0xc8] sm:$0xff] %vm985, %v1542
      %1607 = vst.msk [vmem:[%s334 + $0xd0] sm:$0xff] %vm985, %v1543
      %1608 = vst.msk [vmem:[%s334 + $0xd8] sm:$0xff] %vm985, %v1544
      %1609 = vst.msk [vmem:[%s334 + $0xe0] sm:$0xff] %vm985, %v1545
      %1610 = vst.msk [vmem:[%s334 + $0xe8] sm:$0xff] %vm985, %v1546
      %1611 = vst.msk [vmem:[%s334 + $0xf0] sm:$0xff] %vm985, %v1547
      %1612 = vst.msk [vmem:[%s334 + $0xf8] sm:$0xff] %vm985, %v1548
      %1613 = vst.msk [vmem:[%s334 + $0x100] sm:$0xff] %vm985, %v1549
      %1614 = vst.msk [vmem:[%s334 + $0x108] sm:$0xff] %vm985, %v1550
      %1615 = vst.msk [vmem:[%s334 + $0x110] sm:$0xff] %vm985, %v1551
      %1616 = vst.msk [vmem:[%s334 + $0x118] sm:$0xff] %vm985, %v1552
      %1617 = vst.msk [vmem:[%s334 + $0x120] sm:$0xff] %vm985, %v1553
      %1618 = vst.msk [vmem:[%s334 + $0x128] sm:$0xff] %vm985, %v1554
      %1619 = vst.msk [vmem:[%s334 + $0x130] sm:$0xff] %vm985, %v1555
      %1620 = vst.msk [vmem:[%s334 + $0x138] sm:$0xff] %vm985, %v1556
      %1621 = vst.msk [vmem:[%s334 + $0x140] sm:$0xff] %vm985, %v1557
      %1622 = vst.msk [vmem:[%s334 + $0x148] sm:$0xff] %vm985, %v1558
      %1623 = vst.msk [vmem:[%s334 + $0x150] sm:$0xff] %vm985, %v1559
      %1624 = vst.msk [vmem:[%s334 + $0x158] sm:$0xff] %vm985, %v1560
      %1625 = vst.msk [vmem:[%s334 + $0x160] sm:$0xff] %vm985, %v1561
      %1626 = vst.msk [vmem:[%s334 + $0x168] sm:$0xff] %vm985, %v1562
      %1627 = vst.msk [vmem:[%s334 + $0x170] sm:$0xff] %vm985, %v1563
      %1628 = vst.msk [vmem:[%s334 + $0x178] sm:$0xff] %vm985, %v1564
      %1629 = vst.msk [vmem:[%s334 + $0x180] sm:$0xff] %vm985, %v1565
      %1630 = vst.msk [vmem:[%s334 + $0x188] sm:$0xff] %vm985, %v1566
      %1631 = vst.msk [vmem:[%s334 + $0x190] sm:$0xff] %vm985, %v1567
      %1632 = vst.msk [vmem:[%s334 + $0x198] sm:$0xff] %vm985, %v1568
      %1633 = vst.msk [vmem:[%s334 + $0x1a0] sm:$0xff] %vm985, %v1569
      %1634 = vst.msk [vmem:[%s334 + $0x1a8] sm:$0xff] %vm985, %v1570
      %1635 = vst.msk [vmem:[%s334 + $0x1b0] sm:$0xff] %vm985, %v1571
      %1636 = vst.msk [vmem:[%s334 + $0x1b8] sm:$0xff] %vm985, %v1572
      %1637 = vst.msk [vmem:[%s334 + $0x1c0] sm:$0xff] %vm985, %v1573
      %1638 = vst.msk [vmem:[%s334 + $0x1c8] sm:$0xff] %vm985, %v1574
      %1639 = vst.msk [vmem:[%s334 + $0x1d0] sm:$0xff] %vm985, %v1575
      %1640 = vst.msk [vmem:[%s334 + $0x1d8] sm:$0xff] %vm985, %v1576
      %1641 = vst.msk [vmem:[%s334 + $0x1e0] sm:$0xff] %vm985, %v1577
      %1642 = vst.msk [vmem:[%s334 + $0x1e8] sm:$0xff] %vm985, %v1578
      %1643 = vst.msk [vmem:[%s334 + $0x1f0] sm:$0xff] %vm985, %v1579
      %1644 = vst.msk [vmem:[%s334 + $0x1f8] sm:$0xff] %vm985, %v1580
      %s1645 = smul.u32 64, %s22
      %p1646 = scmp.lt.s32.totalorder %s1645, 4095
      %s1647 = scalar_select %p1646, %s1645, 4095
      %p1648 = scmp.lt.s32.totalorder %s23, 0
      %s1649 = scalar_select %p1648, %s23, 0
      %s1650 = sadd.s32 %s1649, %s1647
      %s1651 = smul.addr %s1650, 8
      %s1652 = scalar_lea.vmem %s3, %s1651
      %p1653 = scmp.lt.s32.totalorder %s22, 63
      %s1654 = scalar_select %p1653, %s22, 63
      %p1655 = scmp.lt.s32.totalorder %s23, 0
      %s1656 = scalar_select %p1655, %s23, 0
      %s1657 = sadd.s32 %s1656, %s1654
      %s1658 = smul.addr %s1657, 8
      %s1659 = scalar_lea.vmem %s4, %s1658
      %p1660 = scmp.lt.s32.totalorder %s22, 63
      %s1661 = scalar_select %p1660, %s22, 63
      %p1662 = scmp.lt.s32.totalorder %s23, 0
      %s1663 = scalar_select %p1662, %s23, 0
      %s1664 = sadd.s32 %s1663, %s1661
      %s1665 = smul.addr %s1664, 8
      %s1666 = scalar_lea.vmem %s5, %s1665
      // Predicated region
      $region33: #{tpu_custom_call.1} parent=31 // pred_check
        %p1667 = pneg %p138
      $region34: #{tpu_custom_call.1} parent=31 // pred_check_branch
        %1669 = sbr.rel (%p1667) target = $region36
      $region35: #{tpu_custom_call.1} parent=31 // pred_region
        %s1670 = smul.u32 64, %s22
      $region36: #{tpu_custom_call.1} parent=31 // pred_fallthru
        _
      // Predicated region
      $region37: #{tpu_custom_call.1} parent=31 // pred_check
        %p1671 = pneg %p166
      $region38: #{tpu_custom_call.1} parent=31 // pred_check_branch
        %1673 = sbr.rel (%p1671) target = $region40
      $region39: #{tpu_custom_call.1} parent=31 // pred_region
        _
      $region40: #{tpu_custom_call.1} parent=31 // pred_fallthru
        _
      // Predicated region
      $region41: #{tpu_custom_call.1} parent=31 // pred_check
        %p1674 = pneg %p194
      $region42: #{tpu_custom_call.1} parent=31 // pred_check_branch
        %1676 = sbr.rel (%p1674) target = $region44
      $region43: #{tpu_custom_call.1} parent=31 // pred_region
        _
      $region44: #{tpu_custom_call.1} parent=31 // pred_fallthru
        _
    $region32: #{tpu_custom_call.1} parent=5 // pred_fallthru
      _
    %p1677 = scmp.le.s32.totalorder 2, %s12
    // Predicated region
    $region45: #{tpu_custom_call.1} parent=5 // pred_check
      %p1678 = pneg %p1677
    $region46: #{tpu_custom_call.1} parent=5 // pred_check_branch
      %1680 = sbr.rel (%p1678) target = $region48
    $region47: #{tpu_custom_call.1} parent=5 // pred_region
      %s1681 = ssub.s32 %s12, 2
      // Predicated region
      $region49: #{tpu_custom_call.1} parent=47 // pred_check
        %p1682 = pneg %p144
      $region50: #{tpu_custom_call.1} parent=47 // pred_check_branch
        %1684 = sbr.rel (%p1682) target = $region52
      $region51: #{tpu_custom_call.1} parent=47 // pred_region
        %s1685 = smul.u32 64, %s25
        %p1686 = scmp.lt.s32.totalorder %s1685, 4095
        %s1687 = scalar_select %p1686, %s1685, 4095
        %p1688 = scmp.lt.s32.totalorder %s26, 0
        %s1689 = scalar_select %p1688, %s26, 0
        %s1690 = sadd.s32 %s1689, %s1687
        %s1691 = smul.addr %s1690, 8
        %s1692 = scalar_lea.vmem %s3, %s1691
      $region52: #{tpu_custom_call.1} parent=47 // pred_fallthru
        _
      // Predicated region
      $region53: #{tpu_custom_call.1} parent=47 // pred_check
        %p1693 = pneg %p172
      $region54: #{tpu_custom_call.1} parent=47 // pred_check_branch
        %1695 = sbr.rel (%p1693) target = $region56
      $region55: #{tpu_custom_call.1} parent=47 // pred_region
        %p1696 = scmp.lt.s32.totalorder %s25, 63
        %s1697 = scalar_select %p1696, %s25, 63
        %p1698 = scmp.lt.s32.totalorder %s26, 0
        %s1699 = scalar_select %p1698, %s26, 0
        %s1700 = sadd.s32 %s1699, %s1697
        %s1701 = smul.addr %s1700, 8
        %s1702 = scalar_lea.vmem %s4, %s1701
      $region56: #{tpu_custom_call.1} parent=47 // pred_fallthru
        _
      // Predicated region
      $region57: #{tpu_custom_call.1} parent=47 // pred_check
        %p1703 = pneg %p200
      $region58: #{tpu_custom_call.1} parent=47 // pred_check_branch
        %1705 = sbr.rel (%p1703) target = $region60
      $region59: #{tpu_custom_call.1} parent=47 // pred_region
        %p1706 = scmp.lt.s32.totalorder %s25, 63
        %s1707 = scalar_select %p1706, %s25, 63
        %p1708 = scmp.lt.s32.totalorder %s26, 0
        %s1709 = scalar_select %p1708, %s26, 0
        %s1710 = sadd.s32 %s1709, %s1707
        %s1711 = smul.addr %s1710, 8
        %s1712 = scalar_lea.vmem %s5, %s1711
      $region60: #{tpu_custom_call.1} parent=47 // pred_fallthru
        _
    $region48: #{tpu_custom_call.1} parent=5 // pred_fallthru
      _
  $region6: #{tpu_custom_call.1} parent=0 // loop_footer
    %s16 = sadd.s32 1, %s12
  $region7: #{tpu_custom_call.1} parent=0 // loop_footer_branch
    %11 = sbr.rel target = $region3
  $region8: #{tpu_custom_call.1} parent=0 // loop_exit
    _

</llo_original>
